<compile_context>
chip_gen: v6e
topology: v6e:2x2x1
jax: 0.10.0
libtpu: 0.0.40
codegen_flags: <defaults>
</compile_context>

<pallas_src>
import numpy as np
import jax
import jax.numpy as jnp
from jax.experimental import pallas as pl
from jax.experimental.pallas import tpu as pltpu

FILTER_LEN = 256
HOP = 128
N_FREQ = FILTER_LEN // 2 + 1      # 129
F_PAD = 256                       # freq channels padded to a lane multiple
CONTEXT = 64
NUM_SAMPLES = 512                 # sr = 16000
N_FRAMES = 4                      # (512 + 64 + 64 - 256) // 128 + 1
HIDDEN = 128
WAV_LEN = CONTEXT + NUM_SAMPLES + HOP // 2   # 640


def _sigmoid(x):
    # tanh form: numerically stable and keeps the transcendental on the EUP slot.
    return 0.5 * (jnp.tanh(0.5 * x) + 1.0)


def silero_vad_kernel(wav_ref, basis_ref,
                      w1_ref, b1_ref, w2_ref, b2_ref, w3_ref, b3_ref,
                      w4_ref, b4_ref, w_lstm_ref, b_lstm_ref,
                      w_out_ref, b_out_ref,
                      prob_ref, state_ref):
    wav = wav_ref[...]                     # [TB, 640] (zero context | data | reflect)
    tb = wav.shape[0]

    # ---- STFT magnitude: stack the 4 overlapping windows along sublanes so the
    # packed (re|im) basis is pushed onto the MXU once for all frames ----
    x_stft = jnp.concatenate(
        [wav[:, t * HOP: t * HOP + FILTER_LEN] for t in range(N_FRAMES)],
        axis=0)                                                        # [4TB, 256]
    spec = jnp.dot(x_stft, basis_ref[...],
                   preferred_element_type=jnp.float32)                 # [4TB, 512]
    re = spec[:, :F_PAD]
    im = spec[:, F_PAD:]
    mag = jnp.sqrt(re * re + im * im)        # [4TB, 256]; lanes >= 129 stay 0

    # ---- Encoder layer 1 (k=3, s=1): one [TB, 1536] tap slab; the four 768-lane
    # im2col windows (256-lane offsets) are stacked along sublanes -> ONE matmul ----
    zpad = jnp.zeros((tb, F_PAD), jnp.float32)
    slab = jnp.concatenate(
        [zpad] + [mag[t * tb:(t + 1) * tb] for t in range(N_FRAMES)] + [zpad],
        axis=-1)                                                       # [TB, 1536]
    x1 = jnp.concatenate(
        [slab[:, t * F_PAD: t * F_PAD + 3 * F_PAD] for t in range(N_FRAMES)],
        axis=0)                                                        # [4TB, 768]
    f1 = jnp.maximum(
        jnp.dot(x1, w1_ref[...], preferred_element_type=jnp.float32)
        + b1_ref[...], 0.0)                                            # [4TB, 128]

    # ---- Encoder layer 2 (k=3, s=2): block-packed weight gives BOTH output frames
    # from one matmul (frame0 in lanes 0:64, frame1 in 64:128) ----
    x2 = jnp.concatenate(
        [jnp.zeros((tb, 128), jnp.float32)]
        + [f1[t * tb:(t + 1) * tb] for t in range(N_FRAMES)], axis=-1)  # [TB, 640]
    f2 = jnp.maximum(
        jnp.dot(x2, w2_ref[...], preferred_element_type=jnp.float32)
        + b2_ref[...], 0.0)                                            # [TB, 128]

    # ---- Encoder layer 3 (k=3, s=2, one output frame): packed layout above is
    # already its im2col, single [TB,128] x [128,64] matmul ----
    f3 = jnp.maximum(
        jnp.dot(f2, w3_ref[...], preferred_element_type=jnp.float32)
        + b3_ref[...], 0.0)                                            # [TB, 64]

    # ---- Encoder layer 4 (k=3, s=1 on a single frame): only the middle tap ----
    f4 = jnp.maximum(
        jnp.dot(f3, w4_ref[...], preferred_element_type=jnp.float32)
        + b4_ref[...], 0.0)                                            # [TB, 128]

    # ---- Decoder: LSTMCell, fresh state (h0 = c0 = 0).  Gates come from x only
    # (w_ih.T), torch order i,f,g,o; the forget gate multiplies c0 == 0 so its
    # sigmoid is skipped entirely. ----
    gates = (jnp.dot(f4, w_lstm_ref[...], preferred_element_type=jnp.float32)
             + b_lstm_ref[...])                                        # [TB, 512]
    i_g = _sigmoid(gates[:, 0:128])
    g_g = jnp.tanh(gates[:, 256:384])
    o_g = _sigmoid(gates[:, 384:512])
    c = i_g * g_g
    h = o_g * jnp.tanh(c)
    state_ref[...] = jnp.concatenate([h, c], axis=-1)   # lane-dense [TB, 256] slab

    # Dropout(0.1) is identity at inference; final 1x1 conv + sigmoid.  w_out is
    # zero-padded to 128 output lanes so the store stays lane-dense; col 0 = logit.
    y = jnp.maximum(h, 0.0)
    logit = (jnp.dot(y, w_out_ref[...], preferred_element_type=jnp.float32)
             + b_out_ref[...])                                         # [TB, 128]
    prob_ref[...] = _sigmoid(logit)


WEIGHT_ORDER = ("basis", "w1", "b1", "w2", "b2", "w3", "b3", "w4", "b4",
                "w_lstm", "b_lstm", "w_out", "b_out")


def silero_vad_forward(data, params, sr=16000, block_b=128):
    """block_b: batch tile (multiple of 8). 128 suits v7x; 256 is fine on v5e/v6e."""
    if sr != 16000:
        raise ValueError("This synthetic kernel implements the sr=16000 path")
    if data.shape[-1] != NUM_SAMPLES:
        raise ValueError(f"Provided number of samples is {data.shape[-1]} "
                         "(Supported value: 512 for 16000 sample rate)")
    B = data.shape[0]
    data = data.astype(jnp.float32)

    # reset_states(): zero context on the left, reflect pad HOP//2 on the right
    # (host glue; the reflected lane reversal has no cheap in-kernel equivalent).
    tail = jnp.flip(data[:, NUM_SAMPLES - HOP // 2 - 1: NUM_SAMPLES - 1], axis=-1)
    wav = jnp.concatenate(
        [jnp.zeros((B, CONTEXT), jnp.float32), data, tail], axis=-1)     # [B, 640]

    # Batch tiling: pad B to a multiple of the block so every tile/store is full.
    tb = min(block_b, ((B + 7) // 8) * 8)
    b_pad = ((B + tb - 1) // tb) * tb
    if b_pad != B:
        wav = jnp.pad(wav, ((0, b_pad - B), (0, 0)))
    grid = (b_pad // tb,)

    weights = [params[k] for k in WEIGHT_ORDER]

    def row_spec(lanes):
        return pl.BlockSpec((tb, lanes), lambda i: (i, 0))

    def const_spec(arr):
        return pl.BlockSpec(arr.shape, lambda i: (0, 0))   # weight stays VMEM-resident

    in_specs = [row_spec(WAV_LEN)] + [const_spec(w) for w in weights]
    out_specs = (row_spec(128), row_spec(2 * HIDDEN))

    prob_slab, state_slab = pl.pallas_call(
        silero_vad_kernel,
        grid=grid,
        out_shape=(jax.ShapeDtypeStruct((b_pad, 128), jnp.float32),
                   jax.ShapeDtypeStruct((b_pad, 2 * HIDDEN), jnp.float32)),
        in_specs=in_specs,
        out_specs=out_specs,
        compiler_params=pltpu.CompilerParams(
            dimension_semantics=("parallel",)),
    )(wav, *weights)

    prob = prob_slab[:B, :1].reshape(B, 1, 1)
    state = jnp.stack([state_slab[:B, :HIDDEN], state_slab[:B, HIDDEN:]], axis=0)
    return prob, state


def init_params(key):
    """Returns (packed kernel params, raw torch-layout params for the reference)."""
    ks = jax.random.split(key, 12)

    def normal(k, shape, scale):
        return np.asarray(jax.random.normal(k, shape, jnp.float32) * scale, np.float32)

    def conv_w(k, cin, cout):
        s = 1.0 / np.sqrt(cin * 3)
        w = normal(k, (cout, cin, 3), s)            # torch Conv1d layout [Cout, Cin, K]
        return np.ascontiguousarray(np.transpose(w, (2, 1, 0)))   # [K, Cin, Cout]

    def conv_b(k, cout, fan_in):
        return normal(k, (1, cout), 1.0 / np.sqrt(fan_in))

    # Fixed STFT forward basis (same construction as the torch buffer).
    fb = np.fft.fft(np.eye(FILTER_LEN))
    basis_r = np.real(fb[:N_FREQ]).T.astype(np.float32)            # [256, 129]
    basis_i = np.imag(fb[:N_FREQ]).T.astype(np.float32)

    s_h = 1.0 / np.sqrt(HIDDEN)
    raw = {
        "basis_r": basis_r, "basis_i": basis_i,
        "w1": conv_w(ks[0], N_FREQ, 128), "b1": conv_b(ks[1], 128, N_FREQ * 3),
        "w2": conv_w(ks[2], 128, 64),     "b2": conv_b(ks[3], 64, 128 * 3),
        "w3": conv_w(ks[4], 64, 64),      "b3": conv_b(ks[5], 64, 64 * 3),
        "w4": conv_w(ks[6], 64, 128),     "b4": conv_b(ks[7], 128, 64 * 3),
        "w_ih": normal(ks[8], (4 * HIDDEN, HIDDEN), s_h),
        "w_hh": normal(ks[9], (4 * HIDDEN, HIDDEN), s_h),
        "b_lstm": normal(ks[10], (1, 4 * HIDDEN), s_h),
        "w_out": normal(ks[11], (1, HIDDEN), s_h),
        "b_out": np.zeros((1, 1), np.float32),
    }

    # ---- host-side packing / zero-padding (no runtime cost) ----
    basis = np.zeros((FILTER_LEN, 2 * F_PAD), np.float32)          # [256, 512]
    basis[:, :N_FREQ] = basis_r
    basis[:, F_PAD:F_PAD + N_FREQ] = basis_i

    w1p = np.zeros((3 * F_PAD, 128), np.float32)                   # im2col, padded Cin
    for k in range(3):
        w1p[k * F_PAD:k * F_PAD + N_FREQ] = raw["w1"][k]

    # layer 2: lhs blocks [zero | f1_0 | f1_1 | f1_2 | f1_3]; output frame 0 uses
    # srcs (-1,0,1), frame 1 uses srcs (1,2,3); the 2x64 outputs pack along lanes.
    w2p = np.zeros((5 * 128, 128), np.float32)
    for k in range(3):
        w2p[k * 128:(k + 1) * 128, 0:64] = raw["w2"][k]
        w2p[(k + 2) * 128:(k + 3) * 128, 64:128] = raw["w2"][k]
    b2p = np.concatenate([raw["b2"], raw["b2"]], axis=1)           # [1, 128]

    # layer 3: single output frame; src 0 -> tap k=1, src 1 -> tap k=2 (k=0 is pad).
    w3p = np.zeros((128, 64), np.float32)
    w3p[0:64] = raw["w3"][1]
    w3p[64:128] = raw["w3"][2]

    # layer 4: single frame, only the middle tap touches real data.
    w4p = np.ascontiguousarray(raw["w4"][1])                       # [64, 128]

    # LSTM, fresh-state path (h0 = 0): gates = x @ w_ih.T + b.
    w_lstm = np.ascontiguousarray(raw["w_ih"].T)                   # [128, 512]

    # final 1x1 conv, zero-padded to 128 output lanes (lane-dense store).
    w_outp = np.zeros((HIDDEN, 128), np.float32)
    w_outp[:, 0] = raw["w_out"][0]
    b_outp = np.zeros((1, 128), np.float32)
    b_outp[0, 0] = raw["b_out"][0, 0]

    params = {
        "basis": basis, "w1": w1p, "b1": raw["b1"], "w2": w2p, "b2": b2p,
        "w3": w3p, "b3": raw["b3"], "w4": w4p, "b4": raw["b4"],
        "w_lstm": w_lstm, "b_lstm": raw["b_lstm"],
        "w_out": w_outp, "b_out": b_outp,
    }
    params = {k: jnp.asarray(v, jnp.float32) for k, v in params.items()}
    return params, raw


def reference_forward_np(data, raw):
    """Pure-numpy float64 reference of the original (unpacked) forward pass."""
    data = np.asarray(data, np.float64)
    B = data.shape[0]
    pn = {k: np.asarray(v, np.float64) for k, v in raw.items()}
    x = np.concatenate([np.zeros((B, CONTEXT)), data], axis=1)
    x = np.pad(x, ((0, 0), (0, HOP // 2)), mode="reflect")
    feats = []
    for t in range(N_FRAMES):
        win = x[:, t * HOP: t * HOP + FILTER_LEN]
        re = win @ pn["basis_r"]
        im = win @ pn["basis_i"]
        feats.append(np.sqrt(re * re + im * im))

    def conv_block(xs, w, b, stride):
        t_in = len(xs)
        t_out = (t_in + 2 - 3) // stride + 1
        outs = []
        for t in range(t_out):
            acc = np.zeros((B, w.shape[2]))
            for k in range(3):
                src = t * stride + k - 1
                if 0 <= src < t_in:
                    acc = acc + xs[src] @ w[k]
            outs.append(np.maximum(acc + b, 0.0))
        return outs

    xs = conv_block(feats, pn["w1"], pn["b1"], 1)
    xs = conv_block(xs, pn["w2"], pn["b2"], 2)
    xs = conv_block(xs, pn["w3"], pn["b3"], 2)
    xs = conv_block(xs, pn["w4"], pn["b4"], 1)
    xv = xs[0]

    def sig(v):
        return 1.0 / (1.0 + np.exp(-v))

    gates = xv @ pn["w_ih"].T + pn["b_lstm"]        # h0 == 0 so the w_hh term vanishes
    i_g = sig(gates[:, 0:128]); f_g = sig(gates[:, 128:256])
    g_g = np.tanh(gates[:, 256:384]); o_g = sig(gates[:, 384:512])
    c = i_g * g_g                                   # c0 == 0
    h = o_g * np.tanh(c)
    y = np.maximum(h, 0.0)
    logit = y @ pn["w_out"].T + pn["b_out"]
    return sig(logit).reshape(B, 1, 1), np.stack([h, c])


if __name__ == "__main__":
    key = jax.random.PRNGKey(0)
    k_data, k_params = jax.random.split(key)
    B = 2
    data = jax.random.normal(k_data, (B, NUM_SAMPLES), jnp.float32)
    params, raw = init_params(k_params)

    prob, state = silero_vad_forward(data, params, sr=16000)
    prob = jax.block_until_ready(prob)
    state = jax.block_until_ready(state)

    assert prob.shape == (B, 1, 1) and state.shape == (2, B, HIDDEN)
    assert np.all(np.isfinite(np.asarray(prob)))

    ref_prob, ref_state = reference_forward_np(np.asarray(data), raw)
    np.testing.assert_allclose(np.asarray(prob), ref_prob, rtol=2e-3, atol=2e-3)
    np.testing.assert_allclose(np.asarray(state), ref_state, rtol=2e-3, atol=2e-3)

    print("KERNEL_OK")
</pallas_src>

<mosaic_0001>
module attributes {stable_mosaic.version = 11 : i64} {
  func.func @silero_vad_kernel(%arg0: i32, %arg1: memref<8x640xf32, #tpu.memory_space<vmem>>, %arg2: memref<256x512xf32, #tpu.memory_space<vmem>>, %arg3: memref<768x128xf32, #tpu.memory_space<vmem>>, %arg4: memref<1x128xf32, #tpu.memory_space<vmem>>, %arg5: memref<640x128xf32, #tpu.memory_space<vmem>>, %arg6: memref<1x128xf32, #tpu.memory_space<vmem>>, %arg7: memref<128x64xf32, #tpu.memory_space<vmem>>, %arg8: memref<1x64xf32, #tpu.memory_space<vmem>>, %arg9: memref<64x128xf32, #tpu.memory_space<vmem>>, %arg10: memref<1x128xf32, #tpu.memory_space<vmem>>, %arg11: memref<128x512xf32, #tpu.memory_space<vmem>>, %arg12: memref<1x512xf32, #tpu.memory_space<vmem>>, %arg13: memref<128x128xf32, #tpu.memory_space<vmem>>, %arg14: memref<1x128xf32, #tpu.memory_space<vmem>>, %arg15: memref<8x128xf32, #tpu.memory_space<vmem>>, %arg16: memref<8x256xf32, #tpu.memory_space<vmem>>) attributes {dimension_semantics = [#tpu.dimension_semantics<parallel>], iteration_bounds = array<i64: 1>, scalar_prefetch = 0 : i64, scratch_operands = 0 : i64, tpu.core_type = #tpu.core_type<tc>, window_params = [{transform_indices = @transform_0, window_bounds = array<i64: 8, 640>}, {pipeline_mode = #tpu.pipeline_mode<synchronous>, transform_indices = @transform_1, window_bounds = array<i64: 256, 512>}, {pipeline_mode = #tpu.pipeline_mode<synchronous>, transform_indices = @transform_2, window_bounds = array<i64: 768, 128>}, {pipeline_mode = #tpu.pipeline_mode<synchronous>, transform_indices = @transform_3, window_bounds = array<i64: 1, 128>}, {pipeline_mode = #tpu.pipeline_mode<synchronous>, transform_indices = @transform_4, window_bounds = array<i64: 640, 128>}, {pipeline_mode = #tpu.pipeline_mode<synchronous>, transform_indices = @transform_5, window_bounds = array<i64: 1, 128>}, {pipeline_mode = #tpu.pipeline_mode<synchronous>, transform_indices = @transform_6, window_bounds = array<i64: 128, 64>}, {pipeline_mode = #tpu.pipeline_mode<synchronous>, transform_indices = @transform_7, window_bounds = array<i64: 1, 64>}, {pipeline_mode = #tpu.pipeline_mode<synchronous>, transform_indices = @transform_8, window_bounds = array<i64: 64, 128>}, {pipeline_mode = #tpu.pipeline_mode<synchronous>, transform_indices = @transform_9, window_bounds = array<i64: 1, 128>}, {pipeline_mode = #tpu.pipeline_mode<synchronous>, transform_indices = @transform_10, window_bounds = array<i64: 128, 512>}, {pipeline_mode = #tpu.pipeline_mode<synchronous>, transform_indices = @transform_11, window_bounds = array<i64: 1, 512>}, {pipeline_mode = #tpu.pipeline_mode<synchronous>, transform_indices = @transform_12, window_bounds = array<i64: 128, 128>}, {pipeline_mode = #tpu.pipeline_mode<synchronous>, transform_indices = @transform_13, window_bounds = array<i64: 1, 128>}, {transform_indices = @transform_14, window_bounds = array<i64: 8, 128>}, {transform_indices = @transform_15, window_bounds = array<i64: 8, 256>}]} {
    %c0 = arith.constant 0 : index
    %c0_0 = arith.constant 0 : index
    %0 = vector.load %arg1[%c0, %c0_0] : memref<8x640xf32, #tpu.memory_space<vmem>>, vector<8x640xf32>
    %1 = vector.extract_strided_slice %0 {offsets = [0, 0], sizes = [8, 256], strides = [1, 1]} : vector<8x640xf32> to vector<8x256xf32>
    %2 = vector.extract_strided_slice %0 {offsets = [0, 128], sizes = [8, 256], strides = [1, 1]} : vector<8x640xf32> to vector<8x256xf32>
    %3 = vector.extract_strided_slice %0 {offsets = [0, 256], sizes = [8, 256], strides = [1, 1]} : vector<8x640xf32> to vector<8x256xf32>
    %4 = vector.extract_strided_slice %0 {offsets = [0, 384], sizes = [8, 256], strides = [1, 1]} : vector<8x640xf32> to vector<8x256xf32>
    %5 = tpu.concatenate %1, %2, %3, %4 in 0 : vector<8x256xf32>, vector<8x256xf32>, vector<8x256xf32>, vector<8x256xf32> -> vector<32x256xf32>
    %c0_1 = arith.constant 0 : index
    %c0_2 = arith.constant 0 : index
    %6 = vector.load %arg2[%c0_1, %c0_2] : memref<256x512xf32, #tpu.memory_space<vmem>>, vector<256x512xf32>
    %cst = arith.constant dense<0.000000e+00> : vector<32x512xf32>
    %7 = tpu.matmul %5, %6, %cst {dimension_numbers = #tpu.dot_dimension_numbers<[1], [0], [0], [1], [0, 0, 1, 1], [], []>} : vector<32x256xf32>, vector<256x512xf32>, vector<32x512xf32> -> vector<32x512xf32>
    %8 = vector.extract_strided_slice %7 {offsets = [0, 0], sizes = [32, 256], strides = [1, 1]} : vector<32x512xf32> to vector<32x256xf32>
    %9 = vector.extract_strided_slice %7 {offsets = [0, 256], sizes = [32, 256], strides = [1, 1]} : vector<32x512xf32> to vector<32x256xf32>
    %10 = arith.mulf %8, %8 : vector<32x256xf32>
    %11 = arith.mulf %9, %9 : vector<32x256xf32>
    %12 = arith.addf %10, %11 : vector<32x256xf32>
    %13 = math.sqrt %12 : vector<32x256xf32>
    %cst_3 = arith.constant 0.000000e+00 : f32
    %14 = vector.broadcast %cst_3 : f32 to vector<8x256xf32>
    %15 = vector.extract_strided_slice %13 {offsets = [0, 0], sizes = [8, 256], strides = [1, 1]} : vector<32x256xf32> to vector<8x256xf32>
    %16 = vector.extract_strided_slice %13 {offsets = [8, 0], sizes = [8, 256], strides = [1, 1]} : vector<32x256xf32> to vector<8x256xf32>
    %17 = vector.extract_strided_slice %13 {offsets = [16, 0], sizes = [8, 256], strides = [1, 1]} : vector<32x256xf32> to vector<8x256xf32>
    %18 = vector.extract_strided_slice %13 {offsets = [24, 0], sizes = [8, 256], strides = [1, 1]} : vector<32x256xf32> to vector<8x256xf32>
    %19 = tpu.concatenate %14, %15, %16, %17, %18, %14 in 1 : vector<8x256xf32>, vector<8x256xf32>, vector<8x256xf32>, vector<8x256xf32>, vector<8x256xf32>, vector<8x256xf32> -> vector<8x1536xf32>
    %20 = vector.extract_strided_slice %19 {offsets = [0, 0], sizes = [8, 768], strides = [1, 1]} : vector<8x1536xf32> to vector<8x768xf32>
    %21 = vector.extract_strided_slice %19 {offsets = [0, 256], sizes = [8, 768], strides = [1, 1]} : vector<8x1536xf32> to vector<8x768xf32>
    %22 = vector.extract_strided_slice %19 {offsets = [0, 512], sizes = [8, 768], strides = [1, 1]} : vector<8x1536xf32> to vector<8x768xf32>
    %23 = vector.extract_strided_slice %19 {offsets = [0, 768], sizes = [8, 768], strides = [1, 1]} : vector<8x1536xf32> to vector<8x768xf32>
    %24 = tpu.concatenate %20, %21, %22, %23 in 0 : vector<8x768xf32>, vector<8x768xf32>, vector<8x768xf32>, vector<8x768xf32> -> vector<32x768xf32>
    %c0_4 = arith.constant 0 : index
    %c0_5 = arith.constant 0 : index
    %25 = vector.load %arg3[%c0_4, %c0_5] : memref<768x128xf32, #tpu.memory_space<vmem>>, vector<768x128xf32>
    %cst_6 = arith.constant dense<0.000000e+00> : vector<32x128xf32>
    %26 = tpu.matmul %24, %25, %cst_6 {dimension_numbers = #tpu.dot_dimension_numbers<[1], [0], [0], [1], [0, 0, 1, 1], [], []>} : vector<32x768xf32>, vector<768x128xf32>, vector<32x128xf32> -> vector<32x128xf32>
    %c0_7 = arith.constant 0 : index
    %c0_8 = arith.constant 0 : index
    %27 = vector.load %arg4[%c0_7, %c0_8] : memref<1x128xf32, #tpu.memory_space<vmem>>, vector<1x128xf32>
    %28 = vector.broadcast %27 : vector<1x128xf32> to vector<32x128xf32>
    %29 = arith.addf %26, %28 : vector<32x128xf32>
    %cst_9 = arith.constant 0.000000e+00 : f32
    %30 = vector.broadcast %cst_9 : f32 to vector<32x128xf32>
    %31 = arith.maximumf %29, %30 : vector<32x128xf32>
    %cst_10 = arith.constant 0.000000e+00 : f32
    %32 = vector.broadcast %cst_10 : f32 to vector<8x128xf32>
    %33 = vector.extract_strided_slice %31 {offsets = [0, 0], sizes = [8, 128], strides = [1, 1]} : vector<32x128xf32> to vector<8x128xf32>
    %34 = vector.extract_strided_slice %31 {offsets = [8, 0], sizes = [8, 128], strides = [1, 1]} : vector<32x128xf32> to vector<8x128xf32>
    %35 = vector.extract_strided_slice %31 {offsets = [16, 0], sizes = [8, 128], strides = [1, 1]} : vector<32x128xf32> to vector<8x128xf32>
    %36 = vector.extract_strided_slice %31 {offsets = [24, 0], sizes = [8, 128], strides = [1, 1]} : vector<32x128xf32> to vector<8x128xf32>
    %37 = tpu.concatenate %32, %33, %34, %35, %36 in 1 : vector<8x128xf32>, vector<8x128xf32>, vector<8x128xf32>, vector<8x128xf32>, vector<8x128xf32> -> vector<8x640xf32>
    %c0_11 = arith.constant 0 : index
    %c0_12 = arith.constant 0 : index
    %38 = vector.load %arg5[%c0_11, %c0_12] : memref<640x128xf32, #tpu.memory_space<vmem>>, vector<640x128xf32>
    %cst_13 = arith.constant dense<0.000000e+00> : vector<8x128xf32>
    %39 = tpu.matmul %37, %38, %cst_13 {dimension_numbers = #tpu.dot_dimension_numbers<[1], [0], [0], [1], [0, 0, 1, 1], [], []>} : vector<8x640xf32>, vector<640x128xf32>, vector<8x128xf32> -> vector<8x128xf32>
    %c0_14 = arith.constant 0 : index
    %c0_15 = arith.constant 0 : index
    %40 = vector.load %arg6[%c0_14, %c0_15] : memref<1x128xf32, #tpu.memory_space<vmem>>, vector<1x128xf32>
    %41 = vector.broadcast %40 : vector<1x128xf32> to vector<8x128xf32>
    %42 = arith.addf %39, %41 : vector<8x128xf32>
    %cst_16 = arith.constant 0.000000e+00 : f32
    %43 = vector.broadcast %cst_16 : f32 to vector<8x128xf32>
    %44 = arith.maximumf %42, %43 : vector<8x128xf32>
    %c0_17 = arith.constant 0 : index
    %c0_18 = arith.constant 0 : index
    %45 = vector.load %arg7[%c0_17, %c0_18] : memref<128x64xf32, #tpu.memory_space<vmem>>, vector<128x64xf32>
    %cst_19 = arith.constant dense<0.000000e+00> : vector<8x64xf32>
    %46 = tpu.matmul %44, %45, %cst_19 {dimension_numbers = #tpu.dot_dimension_numbers<[1], [0], [0], [1], [0, 0, 1, 1], [], []>} : vector<8x128xf32>, vector<128x64xf32>, vector<8x64xf32> -> vector<8x64xf32>
    %c0_20 = arith.constant 0 : index
    %c0_21 = arith.constant 0 : index
    %47 = vector.load %arg8[%c0_20, %c0_21] : memref<1x64xf32, #tpu.memory_space<vmem>>, vector<1x64xf32>
    %48 = vector.broadcast %47 : vector<1x64xf32> to vector<8x64xf32>
    %49 = arith.addf %46, %48 : vector<8x64xf32>
    %cst_22 = arith.constant 0.000000e+00 : f32
    %50 = vector.broadcast %cst_22 : f32 to vector<8x64xf32>
    %51 = arith.maximumf %49, %50 : vector<8x64xf32>
    %c0_23 = arith.constant 0 : index
    %c0_24 = arith.constant 0 : index
    %52 = vector.load %arg9[%c0_23, %c0_24] : memref<64x128xf32, #tpu.memory_space<vmem>>, vector<64x128xf32>
    %cst_25 = arith.constant dense<0.000000e+00> : vector<8x128xf32>
    %53 = tpu.matmul %51, %52, %cst_25 {dimension_numbers = #tpu.dot_dimension_numbers<[1], [0], [0], [1], [0, 0, 1, 1], [], []>} : vector<8x64xf32>, vector<64x128xf32>, vector<8x128xf32> -> vector<8x128xf32>
    %c0_26 = arith.constant 0 : index
    %c0_27 = arith.constant 0 : index
    %54 = vector.load %arg10[%c0_26, %c0_27] : memref<1x128xf32, #tpu.memory_space<vmem>>, vector<1x128xf32>
    %55 = vector.broadcast %54 : vector<1x128xf32> to vector<8x128xf32>
    %56 = arith.addf %53, %55 : vector<8x128xf32>
    %cst_28 = arith.constant 0.000000e+00 : f32
    %57 = vector.broadcast %cst_28 : f32 to vector<8x128xf32>
    %58 = arith.maximumf %56, %57 : vector<8x128xf32>
    %c0_29 = arith.constant 0 : index
    %c0_30 = arith.constant 0 : index
    %59 = vector.load %arg11[%c0_29, %c0_30] : memref<128x512xf32, #tpu.memory_space<vmem>>, vector<128x512xf32>
    %cst_31 = arith.constant dense<0.000000e+00> : vector<8x512xf32>
    %60 = tpu.matmul %58, %59, %cst_31 {dimension_numbers = #tpu.dot_dimension_numbers<[1], [0], [0], [1], [0, 0, 1, 1], [], []>} : vector<8x128xf32>, vector<128x512xf32>, vector<8x512xf32> -> vector<8x512xf32>
    %c0_32 = arith.constant 0 : index
    %c0_33 = arith.constant 0 : index
    %61 = vector.load %arg12[%c0_32, %c0_33] : memref<1x512xf32, #tpu.memory_space<vmem>>, vector<1x512xf32>
    %62 = vector.broadcast %61 : vector<1x512xf32> to vector<8x512xf32>
    %63 = arith.addf %60, %62 : vector<8x512xf32>
    %64 = vector.extract_strided_slice %63 {offsets = [0, 0], sizes = [8, 128], strides = [1, 1]} : vector<8x512xf32> to vector<8x128xf32>
    %cst_34 = arith.constant 5.000000e-01 : f32
    %65 = vector.broadcast %cst_34 : f32 to vector<8x128xf32>
    %66 = arith.mulf %65, %64 : vector<8x128xf32>
    %67 = math.tanh %66 : vector<8x128xf32>
    %cst_35 = arith.constant 1.000000e+00 : f32
    %68 = vector.broadcast %cst_35 : f32 to vector<8x128xf32>
    %69 = arith.addf %67, %68 : vector<8x128xf32>
    %cst_36 = arith.constant 5.000000e-01 : f32
    %70 = vector.broadcast %cst_36 : f32 to vector<8x128xf32>
    %71 = arith.mulf %70, %69 : vector<8x128xf32>
    %72 = vector.extract_strided_slice %63 {offsets = [0, 256], sizes = [8, 128], strides = [1, 1]} : vector<8x512xf32> to vector<8x128xf32>
    %73 = math.tanh %72 : vector<8x128xf32>
    %74 = vector.extract_strided_slice %63 {offsets = [0, 384], sizes = [8, 128], strides = [1, 1]} : vector<8x512xf32> to vector<8x128xf32>
    %cst_37 = arith.constant 5.000000e-01 : f32
    %75 = vector.broadcast %cst_37 : f32 to vector<8x128xf32>
    %76 = arith.mulf %75, %74 : vector<8x128xf32>
    %77 = math.tanh %76 : vector<8x128xf32>
    %cst_38 = arith.constant 1.000000e+00 : f32
    %78 = vector.broadcast %cst_38 : f32 to vector<8x128xf32>
    %79 = arith.addf %77, %78 : vector<8x128xf32>
    %cst_39 = arith.constant 5.000000e-01 : f32
    %80 = vector.broadcast %cst_39 : f32 to vector<8x128xf32>
    %81 = arith.mulf %80, %79 : vector<8x128xf32>
    %82 = arith.mulf %71, %73 : vector<8x128xf32>
    %83 = math.tanh %82 : vector<8x128xf32>
    %84 = arith.mulf %81, %83 : vector<8x128xf32>
    %85 = tpu.concatenate %84, %82 in 1 : vector<8x128xf32>, vector<8x128xf32> -> vector<8x256xf32>
    %c0_40 = arith.constant 0 : index
    %c0_41 = arith.constant 0 : index
    %86 = vector.load %arg16[%c0_40, %c0_41] : memref<8x256xf32, #tpu.memory_space<vmem>>, vector<8x256xf32>
    tpu.vector_store %arg16[%c0_40, %c0_41], %85 {strides = array<i32>} : memref<8x256xf32, #tpu.memory_space<vmem>>, vector<8x256xf32>,
    %cst_42 = arith.constant 0.000000e+00 : f32
    %87 = vector.broadcast %cst_42 : f32 to vector<8x128xf32>
    %88 = arith.maximumf %84, %87 : vector<8x128xf32>
    %c0_43 = arith.constant 0 : index
    %c0_44 = arith.constant 0 : index
    %89 = vector.load %arg13[%c0_43, %c0_44] : memref<128x128xf32, #tpu.memory_space<vmem>>, vector<128x128xf32>
    %cst_45 = arith.constant dense<0.000000e+00> : vector<8x128xf32>
    %90 = tpu.matmul %88, %89, %cst_45 {dimension_numbers = #tpu.dot_dimension_numbers<[1], [0], [0], [1], [0, 0, 1, 1], [], []>} : vector<8x128xf32>, vector<128x128xf32>, vector<8x128xf32> -> vector<8x128xf32>
    %c0_46 = arith.constant 0 : index
    %c0_47 = arith.constant 0 : index
    %91 = vector.load %arg14[%c0_46, %c0_47] : memref<1x128xf32, #tpu.memory_space<vmem>>, vector<1x128xf32>
    %92 = vector.broadcast %91 : vector<1x128xf32> to vector<8x128xf32>
    %93 = arith.addf %90, %92 : vector<8x128xf32>
    %cst_48 = arith.constant 5.000000e-01 : f32
    %94 = vector.broadcast %cst_48 : f32 to vector<8x128xf32>
    %95 = arith.mulf %94, %93 : vector<8x128xf32>
    %96 = math.tanh %95 : vector<8x128xf32>
    %cst_49 = arith.constant 1.000000e+00 : f32
    %97 = vector.broadcast %cst_49 : f32 to vector<8x128xf32>
    %98 = arith.addf %96, %97 : vector<8x128xf32>
    %cst_50 = arith.constant 5.000000e-01 : f32
    %99 = vector.broadcast %cst_50 : f32 to vector<8x128xf32>
    %100 = arith.mulf %99, %98 : vector<8x128xf32>
    %c0_51 = arith.constant 0 : index
    %c0_52 = arith.constant 0 : index
    %101 = vector.load %arg15[%c0_51, %c0_52] : memref<8x128xf32, #tpu.memory_space<vmem>>, vector<8x128xf32>
    tpu.vector_store %arg15[%c0_51, %c0_52], %100 {strides = array<i32>} : memref<8x128xf32, #tpu.memory_space<vmem>>, vector<8x128xf32>,
    return
  }
  func.func @transform_0(%arg0: i32) -> (i32, i32) {
    %c0_i32 = arith.constant 0 : i32
    %c0_i32_0 = arith.constant 0 : i32
    return %arg0, %c0_i32 : i32, i32
  }
  func.func @transform_1(%arg0: i32) -> (i32, i32) {
    %c0_i32 = arith.constant 0 : i32
    %c0_i32_0 = arith.constant 0 : i32
    %c0_i32_1 = arith.constant 0 : i32
    return %c0_i32, %c0_i32_0 : i32, i32
  }
  func.func @transform_2(%arg0: i32) -> (i32, i32) {
    %c0_i32 = arith.constant 0 : i32
    %c0_i32_0 = arith.constant 0 : i32
    %c0_i32_1 = arith.constant 0 : i32
    return %c0_i32, %c0_i32_0 : i32, i32
  }
  func.func @transform_3(%arg0: i32) -> (i32, i32) {
    %c0_i32 = arith.constant 0 : i32
    %c0_i32_0 = arith.constant 0 : i32
    %c0_i32_1 = arith.constant 0 : i32
    return %c0_i32, %c0_i32_0 : i32, i32
  }
  func.func @transform_4(%arg0: i32) -> (i32, i32) {
    %c0_i32 = arith.constant 0 : i32
    %c0_i32_0 = arith.constant 0 : i32
    %c0_i32_1 = arith.constant 0 : i32
    return %c0_i32, %c0_i32_0 : i32, i32
  }
  func.func @transform_5(%arg0: i32) -> (i32, i32) {
    %c0_i32 = arith.constant 0 : i32
    %c0_i32_0 = arith.constant 0 : i32
    %c0_i32_1 = arith.constant 0 : i32
    return %c0_i32, %c0_i32_0 : i32, i32
  }
  func.func @transform_6(%arg0: i32) -> (i32, i32) {
    %c0_i32 = arith.constant 0 : i32
    %c0_i32_0 = arith.constant 0 : i32
    %c0_i32_1 = arith.constant 0 : i32
    return %c0_i32, %c0_i32_0 : i32, i32
  }
  func.func @transform_7(%arg0: i32) -> (i32, i32) {
    %c0_i32 = arith.constant 0 : i32
    %c0_i32_0 = arith.constant 0 : i32
    %c0_i32_1 = arith.constant 0 : i32
    return %c0_i32, %c0_i32_0 : i32, i32
  }
  func.func @transform_8(%arg0: i32) -> (i32, i32) {
    %c0_i32 = arith.constant 0 : i32
    %c0_i32_0 = arith.constant 0 : i32
    %c0_i32_1 = arith.constant 0 : i32
    return %c0_i32, %c0_i32_0 : i32, i32
  }
  func.func @transform_9(%arg0: i32) -> (i32, i32) {
    %c0_i32 = arith.constant 0 : i32
    %c0_i32_0 = arith.constant 0 : i32
    %c0_i32_1 = arith.constant 0 : i32
    return %c0_i32, %c0_i32_0 : i32, i32
  }
  func.func @transform_10(%arg0: i32) -> (i32, i32) {
    %c0_i32 = arith.constant 0 : i32
    %c0_i32_0 = arith.constant 0 : i32
    %c0_i32_1 = arith.constant 0 : i32
    return %c0_i32, %c0_i32_0 : i32, i32
  }
  func.func @transform_11(%arg0: i32) -> (i32, i32) {
    %c0_i32 = arith.constant 0 : i32
    %c0_i32_0 = arith.constant 0 : i32
    %c0_i32_1 = arith.constant 0 : i32
    return %c0_i32, %c0_i32_0 : i32, i32
  }
  func.func @transform_12(%arg0: i32) -> (i32, i32) {
    %c0_i32 = arith.constant 0 : i32
    %c0_i32_0 = arith.constant 0 : i32
    %c0_i32_1 = arith.constant 0 : i32
    return %c0_i32, %c0_i32_0 : i32, i32
  }
  func.func @transform_13(%arg0: i32) -> (i32, i32) {
    %c0_i32 = arith.constant 0 : i32
    %c0_i32_0 = arith.constant 0 : i32
    %c0_i32_1 = arith.constant 0 : i32
    return %c0_i32, %c0_i32_0 : i32, i32
  }
  func.func @transform_14(%arg0: i32) -> (i32, i32) {
    %c0_i32 = arith.constant 0 : i32
    %c0_i32_0 = arith.constant 0 : i32
    return %arg0, %c0_i32 : i32, i32
  }
  func.func @transform_15(%arg0: i32) -> (i32, i32) {
    %c0_i32 = arith.constant 0 : i32
    %c0_i32_0 = arith.constant 0 : i32
    return %arg0, %c0_i32 : i32, i32
  }
}

</mosaic_0001>

<llo_original>
// kernel: tpu_custom_call.1
$region0: #{tpu_custom_call.1}
  #allocation0 [shape = 'u32[]', space=smem, size = 0x4, offset = 0x4, fixed_abs, tag = 'smem constant byte address 0x4 - core index']
  #allocation1 [shape = 'u32[144,128]{1,0:T(1,128)}', space=vmem, size = 0x12000, scoped, tag = 'internal scratch']
  %s0 = inlined_call_operand.hbm [shape: f32[8,640], index: 0, kind: input, shape index: {}]
  %s1 = inlined_call_operand.hbm [shape: f32[256,512], index: 1, kind: input, shape index: {}]
  %s2 = inlined_call_operand.hbm [shape: f32[768,128], index: 2, kind: input, shape index: {}]
  %s3 = inlined_call_operand.vmem [shape: f32[1,128], index: 3, kind: input, shape index: {}]
  %s4 = inlined_call_operand.hbm [shape: f32[640,128], index: 4, kind: input, shape index: {}]
  %s5 = inlined_call_operand.vmem [shape: f32[1,128], index: 5, kind: input, shape index: {}]
  %s6 = inlined_call_operand.vmem [shape: f32[128,64], index: 6, kind: input, shape index: {}]
  %s7 = inlined_call_operand.vmem [shape: f32[1,64], index: 7, kind: input, shape index: {}]
  %s8 = inlined_call_operand.vmem [shape: f32[64,128], index: 8, kind: input, shape index: {}]
  %s9 = inlined_call_operand.vmem [shape: f32[1,128], index: 9, kind: input, shape index: {}]
  %s10 = inlined_call_operand.hbm [shape: f32[128,512], index: 10, kind: input, shape index: {}]
  %s11 = inlined_call_operand.vmem [shape: f32[1,512], index: 11, kind: input, shape index: {}]
  %s12 = inlined_call_operand.vmem [shape: f32[128,128], index: 12, kind: input, shape index: {}]
  %s13 = inlined_call_operand.vmem [shape: f32[1,128], index: 13, kind: input, shape index: {}]
  %s14 = inlined_call_operand.hbm [shape: f32[8,128], index: 14, kind: output, shape index: {0}]
  %s15 = inlined_call_operand.hbm [shape: f32[8,256], index: 15, kind: output, shape index: {1}]
  %16 = xla_tuple %s14, %s15
  %s17 = sld [smem:[#allocation0]]
  $region94: #{tpu_custom_call.1} parent=0
    _
  %s19 = ssub.s32 1, %s17
  %s20 = scalar_select 0, %s19, %s17
  $region1: #{tpu_custom_call.1} parent=0
    #allocation2 [shape = 'u8[20480]{0}', space=vmem, size = 0x5000, scoped, tag = 'input window, operand 0, single buffered']
    #allocation3 [shape = 's32[1]{0}', space=sflag, size = 0x4, scoped, tag = 'scoped memory for tpu_custom_call.1']
    #allocation4 [shape = 's32[1]{0}', space=sflag, size = 0x4, scoped, tag = 'scoped memory for tpu_custom_call.1']
    #allocation5 [shape = 'u8[524288]{0}', space=vmem, size = 0x80000, scoped, tag = 'input window, operand 1, single buffered']
    #allocation6 [shape = 's32[1]{0}', space=sflag, size = 0x4, scoped, tag = 'scoped memory for tpu_custom_call.1']
    #allocation7 [shape = 'u8[393216]{0}', space=vmem, size = 0x60000, scoped, tag = 'input window, operand 2, single buffered']
    #allocation8 [shape = 'u8[327680]{0}', space=vmem, size = 0x50000, scoped, tag = 'input window, operand 4, single buffered']
    #allocation9 [shape = 's32[1]{0}', space=sflag, size = 0x4, scoped, tag = 'scoped memory for tpu_custom_call.1']
    #allocation10 [shape = 'u8[262144]{0}', space=vmem, size = 0x40000, scoped, tag = 'input window, operand 10, single buffered']
    #allocation11 [shape = 'u8[4096]{0}', space=vmem, size = 0x1000, scoped, tag = 'output window, operand 0, single buffered']
    #allocation12 [shape = 'u8[8192]{0}', space=vmem, size = 0x2000, scoped, tag = 'output window, operand 1, single buffered']
    #allocation13 [shape = 's32[1]{0}', space=sflag, size = 0x4, scoped, tag = 'scoped memory for tpu_custom_call.1']
    %21 = vsyncpa [#allocation3], 0
    %22 = vsyncpa [#allocation6], 0
    %23 = vsyncpa [#allocation9], 0
    %24 = vsyncpa [#allocation4], 0
    %25 = vsyncpa [#allocation13], 0
    // Predicated region
    $region2: #{tpu_custom_call.1} parent=1 // pred_check
      _
    $region3: #{tpu_custom_call.1} parent=1 // pred_check_branch
      %27 = sbr.rel (0) target = $region5
    $region4: #{tpu_custom_call.1} parent=1 // pred_region
      %s29 = ssub.s32 640, 640
      %30 = vsyncadd [#allocation3], %s29
      %s32 = sshll.u32 [#allocation2], 4
      %s33 = int_to_ptr.vmem [resolvable:$true] %s32
      %35 = dma.hbm_to_vmem [thread:$0]  %s0, 640, %s33, [#allocation3]
    $region5: #{tpu_custom_call.1} parent=1 // pred_fallthru
      _
    // Predicated region
    $region6: #{tpu_custom_call.1} parent=1 // pred_check
      _
    $region7: #{tpu_custom_call.1} parent=1 // pred_check_branch
      %37 = sbr.rel (0) target = $region9
    $region8: #{tpu_custom_call.1} parent=1 // pred_region
      %s39 = ssub.s32 16384, 16384
      %40 = vsyncadd [#allocation6], %s39
      %s41 = sshll.u32 [#allocation5], 4
      %s42 = int_to_ptr.vmem [resolvable:$true] %s41
      %47 = dma.hbm_to_vmem [thread:$0]  %s1, 16384, %s42, [#allocation6], 512, 512, 32
    $region9: #{tpu_custom_call.1} parent=1 // pred_fallthru
      _
    // Predicated region
    $region10: #{tpu_custom_call.1} parent=1 // pred_check
      _
    $region11: #{tpu_custom_call.1} parent=1 // pred_check_branch
      %49 = sbr.rel (0) target = $region13
    $region12: #{tpu_custom_call.1} parent=1 // pred_region
      %s51 = ssub.s32 12288, 12288
      %52 = vsyncadd [#allocation6], %s51
      %s53 = sshll.u32 [#allocation7], 4
      %s54 = int_to_ptr.vmem [resolvable:$true] %s53
      %59 = dma.hbm_to_vmem [thread:$0]  %s2, 12288, %s54, [#allocation6], 128, 128, 8
    $region13: #{tpu_custom_call.1} parent=1 // pred_fallthru
      _
    // Predicated region
    $region14: #{tpu_custom_call.1} parent=1 // pred_check
      _
    $region15: #{tpu_custom_call.1} parent=1 // pred_check_branch
      %61 = sbr.rel (0) target = $region17
    $region16: #{tpu_custom_call.1} parent=1 // pred_region
      _
    $region17: #{tpu_custom_call.1} parent=1 // pred_fallthru
      _
    // Predicated region
    $region18: #{tpu_custom_call.1} parent=1 // pred_check
      _
    $region19: #{tpu_custom_call.1} parent=1 // pred_check_branch
      %63 = sbr.rel (0) target = $region21
    $region20: #{tpu_custom_call.1} parent=1 // pred_region
      %s65 = ssub.s32 10240, 10240
      %66 = vsyncadd [#allocation9], %s65
      %s67 = sshll.u32 [#allocation8], 4
      %s68 = int_to_ptr.vmem [resolvable:$true] %s67
      %73 = dma.hbm_to_vmem [thread:$0]  %s4, 10240, %s68, [#allocation9], 128, 128, 8
    $region21: #{tpu_custom_call.1} parent=1 // pred_fallthru
      _
    // Predicated region
    $region22: #{tpu_custom_call.1} parent=1 // pred_check
      _
    $region23: #{tpu_custom_call.1} parent=1 // pred_check_branch
      %75 = sbr.rel (0) target = $region25
    $region24: #{tpu_custom_call.1} parent=1 // pred_region
      _
    $region25: #{tpu_custom_call.1} parent=1 // pred_fallthru
      _
    // Predicated region
    $region26: #{tpu_custom_call.1} parent=1 // pred_check
      _
    $region27: #{tpu_custom_call.1} parent=1 // pred_check_branch
      %77 = sbr.rel (0) target = $region29
    $region28: #{tpu_custom_call.1} parent=1 // pred_region
      _
    $region29: #{tpu_custom_call.1} parent=1 // pred_fallthru
      _
    // Predicated region
    $region30: #{tpu_custom_call.1} parent=1 // pred_check
      _
    $region31: #{tpu_custom_call.1} parent=1 // pred_check_branch
      %79 = sbr.rel (0) target = $region33
    $region32: #{tpu_custom_call.1} parent=1 // pred_region
      _
    $region33: #{tpu_custom_call.1} parent=1 // pred_fallthru
      _
    // Predicated region
    $region34: #{tpu_custom_call.1} parent=1 // pred_check
      _
    $region35: #{tpu_custom_call.1} parent=1 // pred_check_branch
      %81 = sbr.rel (0) target = $region37
    $region36: #{tpu_custom_call.1} parent=1 // pred_region
      _
    $region37: #{tpu_custom_call.1} parent=1 // pred_fallthru
      _
    // Predicated region
    $region38: #{tpu_custom_call.1} parent=1 // pred_check
      _
    $region39: #{tpu_custom_call.1} parent=1 // pred_check_branch
      %83 = sbr.rel (0) target = $region41
    $region40: #{tpu_custom_call.1} parent=1 // pred_region
      _
    $region41: #{tpu_custom_call.1} parent=1 // pred_fallthru
      _
    // Predicated region
    $region42: #{tpu_custom_call.1} parent=1 // pred_check
      _
    $region43: #{tpu_custom_call.1} parent=1 // pred_check_branch
      %85 = sbr.rel (0) target = $region45
    $region44: #{tpu_custom_call.1} parent=1 // pred_region
      %s87 = ssub.s32 8192, 8192
      %88 = vsyncadd [#allocation9], %s87
      %s89 = sshll.u32 [#allocation10], 4
      %s90 = int_to_ptr.vmem [resolvable:$true] %s89
      %95 = dma.hbm_to_vmem [thread:$0]  %s10, 8192, %s90, [#allocation9], 512, 512, 32
    $region45: #{tpu_custom_call.1} parent=1 // pred_fallthru
      _
    // Predicated region
    $region46: #{tpu_custom_call.1} parent=1 // pred_check
      _
    $region47: #{tpu_custom_call.1} parent=1 // pred_check_branch
      %97 = sbr.rel (0) target = $region49
    $region48: #{tpu_custom_call.1} parent=1 // pred_region
      _
    $region49: #{tpu_custom_call.1} parent=1 // pred_fallthru
      _
    // Predicated region
    $region50: #{tpu_custom_call.1} parent=1 // pred_check
      _
    $region51: #{tpu_custom_call.1} parent=1 // pred_check_branch
      %99 = sbr.rel (0) target = $region53
    $region52: #{tpu_custom_call.1} parent=1 // pred_region
      _
    $region53: #{tpu_custom_call.1} parent=1 // pred_fallthru
      _
    // Predicated region
    $region54: #{tpu_custom_call.1} parent=1 // pred_check
      _
    $region55: #{tpu_custom_call.1} parent=1 // pred_check_branch
      %101 = sbr.rel (0) target = $region57
    $region56: #{tpu_custom_call.1} parent=1 // pred_region
      _
    $region57: #{tpu_custom_call.1} parent=1 // pred_fallthru
      _
    // Predicated region
    $region58: #{tpu_custom_call.1} parent=1 // pred_check
      _
    $region59: #{tpu_custom_call.1} parent=1 // pred_check_branch
      %103 = sbr.rel (0) target = $region61
    $region60: #{tpu_custom_call.1} parent=1 // pred_region
      %104 = dma.done [#allocation3], 640
    $region61: #{tpu_custom_call.1} parent=1 // pred_fallthru
      _
    // Predicated region
    $region62: #{tpu_custom_call.1} parent=1 // pred_check
      _
    $region63: #{tpu_custom_call.1} parent=1 // pred_check_branch
      %106 = sbr.rel (0) target = $region65
    $region64: #{tpu_custom_call.1} parent=1 // pred_region
      %107 = dma.done [#allocation6], 16384
    $region65: #{tpu_custom_call.1} parent=1 // pred_fallthru
      _
    // Predicated region
    $region66: #{tpu_custom_call.1} parent=1 // pred_check
      _
    $region67: #{tpu_custom_call.1} parent=1 // pred_check_branch
      %109 = sbr.rel (0) target = $region69
    $region68: #{tpu_custom_call.1} parent=1 // pred_region
      %110 = dma.done [#allocation6], 12288
    $region69: #{tpu_custom_call.1} parent=1 // pred_fallthru
      _
    // Predicated region
    $region70: #{tpu_custom_call.1} parent=1 // pred_check
      _
    $region71: #{tpu_custom_call.1} parent=1 // pred_check_branch
      %112 = sbr.rel (0) target = $region73
    $region72: #{tpu_custom_call.1} parent=1 // pred_region
      %113 = dma.done [#allocation9], 10240
    $region73: #{tpu_custom_call.1} parent=1 // pred_fallthru
      _
    // Predicated region
    $region74: #{tpu_custom_call.1} parent=1 // pred_check
      _
    $region75: #{tpu_custom_call.1} parent=1 // pred_check_branch
      %115 = sbr.rel (0) target = $region77
    $region76: #{tpu_custom_call.1} parent=1 // pred_region
      %116 = dma.done [#allocation9], 8192
    $region77: #{tpu_custom_call.1} parent=1 // pred_fallthru
      _
    %v117 = vld [vmem:[#allocation2] sm:$0xff]
    %v118 = vld [vmem:[#allocation2 + $0x8] sm:$0xff]
    %v119 = vld [vmem:[#allocation2 + $0x10] sm:$0xff]
    %v120 = vld [vmem:[#allocation2 + $0x18] sm:$0xff]
    %v121 = vld [vmem:[#allocation2 + $0x20] sm:$0xff]
    %v122 = vld [vmem:[#allocation5] sm:$0xff]
    %v123 = vld [vmem:[#allocation5 + $0x8] sm:$0xff]
    %v124 = vld [vmem:[#allocation5 + $0x10] sm:$0xff]
    %v125 = vld [vmem:[#allocation5 + $0x18] sm:$0xff]
    %v126 = vld [vmem:[#allocation5 + $0x20] sm:$0xff]
    %v127 = vld [vmem:[#allocation5 + $0x28] sm:$0xff]
    %v128 = vld [vmem:[#allocation5 + $0x30] sm:$0xff]
    %v129 = vld [vmem:[#allocation5 + $0x38] sm:$0xff]
    %v130 = vld [vmem:[#allocation5 + $0x40] sm:$0xff]
    %v131 = vld [vmem:[#allocation5 + $0x48] sm:$0xff]
    %v132 = vld [vmem:[#allocation5 + $0x50] sm:$0xff]
    %v133 = vld [vmem:[#allocation5 + $0x58] sm:$0xff]
    %v134 = vld [vmem:[#allocation5 + $0x60] sm:$0xff]
    %v135 = vld [vmem:[#allocation5 + $0x68] sm:$0xff]
    %v136 = vld [vmem:[#allocation5 + $0x70] sm:$0xff]
    %v137 = vld [vmem:[#allocation5 + $0x78] sm:$0xff]
    %v138 = vld [vmem:[#allocation5 + $0x80] sm:$0xff]
    %v139 = vld [vmem:[#allocation5 + $0x88] sm:$0xff]
    %v140 = vld [vmem:[#allocation5 + $0x90] sm:$0xff]
    %v141 = vld [vmem:[#allocation5 + $0x98] sm:$0xff]
    %v142 = vld [vmem:[#allocation5 + $0xa0] sm:$0xff]
    %v143 = vld [vmem:[#allocation5 + $0xa8] sm:$0xff]
    %v144 = vld [vmem:[#allocation5 + $0xb0] sm:$0xff]
    %v145 = vld [vmem:[#allocation5 + $0xb8] sm:$0xff]
    %v146 = vld [vmem:[#allocation5 + $0xc0] sm:$0xff]
    %v147 = vld [vmem:[#allocation5 + $0xc8] sm:$0xff]
    %v148 = vld [vmem:[#allocation5 + $0xd0] sm:$0xff]
    %v149 = vld [vmem:[#allocation5 + $0xd8] sm:$0xff]
    %v150 = vld [vmem:[#allocation5 + $0xe0] sm:$0xff]
    %v151 = vld [vmem:[#allocation5 + $0xe8] sm:$0xff]
    %v152 = vld [vmem:[#allocation5 + $0xf0] sm:$0xff]
    %v153 = vld [vmem:[#allocation5 + $0xf8] sm:$0xff]
    %v154 = vld [vmem:[#allocation5 + $0x100] sm:$0xff]
    %v155 = vld [vmem:[#allocation5 + $0x108] sm:$0xff]
    %v156 = vld [vmem:[#allocation5 + $0x110] sm:$0xff]
    %v157 = vld [vmem:[#allocation5 + $0x118] sm:$0xff]
    %v158 = vld [vmem:[#allocation5 + $0x120] sm:$0xff]
    %v159 = vld [vmem:[#allocation5 + $0x128] sm:$0xff]
    %v160 = vld [vmem:[#allocation5 + $0x130] sm:$0xff]
    %v161 = vld [vmem:[#allocation5 + $0x138] sm:$0xff]
    %v162 = vld [vmem:[#allocation5 + $0x140] sm:$0xff]
    %v163 = vld [vmem:[#allocation5 + $0x148] sm:$0xff]
    %v164 = vld [vmem:[#allocation5 + $0x150] sm:$0xff]
    %v165 = vld [vmem:[#allocation5 + $0x158] sm:$0xff]
    %v166 = vld [vmem:[#allocation5 + $0x160] sm:$0xff]
    %v167 = vld [vmem:[#allocation5 + $0x168] sm:$0xff]
    %v168 = vld [vmem:[#allocation5 + $0x170] sm:$0xff]
    %v169 = vld [vmem:[#allocation5 + $0x178] sm:$0xff]
    %v170 = vld [vmem:[#allocation5 + $0x180] sm:$0xff]
    %v171 = vld [vmem:[#allocation5 + $0x188] sm:$0xff]
    %v172 = vld [vmem:[#allocation5 + $0x190] sm:$0xff]
    %v173 = vld [vmem:[#allocation5 + $0x198] sm:$0xff]
    %v174 = vld [vmem:[#allocation5 + $0x1a0] sm:$0xff]
    %v175 = vld [vmem:[#allocation5 + $0x1a8] sm:$0xff]
    %v176 = vld [vmem:[#allocation5 + $0x1b0] sm:$0xff]
    %v177 = vld [vmem:[#allocation5 + $0x1b8] sm:$0xff]
    %v178 = vld [vmem:[#allocation5 + $0x1c0] sm:$0xff]
    %v179 = vld [vmem:[#allocation5 + $0x1c8] sm:$0xff]
    %v180 = vld [vmem:[#allocation5 + $0x1d0] sm:$0xff]
    %v181 = vld [vmem:[#allocation5 + $0x1d8] sm:$0xff]
    %v182 = vld [vmem:[#allocation5 + $0x1e0] sm:$0xff]
    %v183 = vld [vmem:[#allocation5 + $0x1e8] sm:$0xff]
    %v184 = vld [vmem:[#allocation5 + $0x1f0] sm:$0xff]
    %v185 = vld [vmem:[#allocation5 + $0x1f8] sm:$0xff]
    %v186 = vld [vmem:[#allocation5 + $0x200] sm:$0xff]
    %v187 = vld [vmem:[#allocation5 + $0x208] sm:$0xff]
    %v188 = vld [vmem:[#allocation5 + $0x210] sm:$0xff]
    %v189 = vld [vmem:[#allocation5 + $0x218] sm:$0xff]
    %v190 = vld [vmem:[#allocation5 + $0x220] sm:$0xff]
    %v191 = vld [vmem:[#allocation5 + $0x228] sm:$0xff]
    %v192 = vld [vmem:[#allocation5 + $0x230] sm:$0xff]
    %v193 = vld [vmem:[#allocation5 + $0x238] sm:$0xff]
    %v194 = vld [vmem:[#allocation5 + $0x240] sm:$0xff]
    %v195 = vld [vmem:[#allocation5 + $0x248] sm:$0xff]
    %v196 = vld [vmem:[#allocation5 + $0x250] sm:$0xff]
    %v197 = vld [vmem:[#allocation5 + $0x258] sm:$0xff]
    %v198 = vld [vmem:[#allocation5 + $0x260] sm:$0xff]
    %v199 = vld [vmem:[#allocation5 + $0x268] sm:$0xff]
    %v200 = vld [vmem:[#allocation5 + $0x270] sm:$0xff]
    %v201 = vld [vmem:[#allocation5 + $0x278] sm:$0xff]
    %v202 = vld [vmem:[#allocation5 + $0x280] sm:$0xff]
    %v203 = vld [vmem:[#allocation5 + $0x288] sm:$0xff]
    %v204 = vld [vmem:[#allocation5 + $0x290] sm:$0xff]
    %v205 = vld [vmem:[#allocation5 + $0x298] sm:$0xff]
    %v206 = vld [vmem:[#allocation5 + $0x2a0] sm:$0xff]
    %v207 = vld [vmem:[#allocation5 + $0x2a8] sm:$0xff]
    %v208 = vld [vmem:[#allocation5 + $0x2b0] sm:$0xff]
    %v209 = vld [vmem:[#allocation5 + $0x2b8] sm:$0xff]
    %v210 = vld [vmem:[#allocation5 + $0x2c0] sm:$0xff]
    %v211 = vld [vmem:[#allocation5 + $0x2c8] sm:$0xff]
    %v212 = vld [vmem:[#allocation5 + $0x2d0] sm:$0xff]
    %v213 = vld [vmem:[#allocation5 + $0x2d8] sm:$0xff]
    %v214 = vld [vmem:[#allocation5 + $0x2e0] sm:$0xff]
    %v215 = vld [vmem:[#allocation5 + $0x2e8] sm:$0xff]
    %v216 = vld [vmem:[#allocation5 + $0x2f0] sm:$0xff]
    %v217 = vld [vmem:[#allocation5 + $0x2f8] sm:$0xff]
    %v218 = vld [vmem:[#allocation5 + $0x300] sm:$0xff]
    %v219 = vld [vmem:[#allocation5 + $0x308] sm:$0xff]
    %v220 = vld [vmem:[#allocation5 + $0x310] sm:$0xff]
    %v221 = vld [vmem:[#allocation5 + $0x318] sm:$0xff]
    %v222 = vld [vmem:[#allocation5 + $0x320] sm:$0xff]
    %v223 = vld [vmem:[#allocation5 + $0x328] sm:$0xff]
    %v224 = vld [vmem:[#allocation5 + $0x330] sm:$0xff]
    %v225 = vld [vmem:[#allocation5 + $0x338] sm:$0xff]
    %v226 = vld [vmem:[#allocation5 + $0x340] sm:$0xff]
    %v227 = vld [vmem:[#allocation5 + $0x348] sm:$0xff]
    %v228 = vld [vmem:[#allocation5 + $0x350] sm:$0xff]
    %v229 = vld [vmem:[#allocation5 + $0x358] sm:$0xff]
    %v230 = vld [vmem:[#allocation5 + $0x360] sm:$0xff]
    %v231 = vld [vmem:[#allocation5 + $0x368] sm:$0xff]
    %v232 = vld [vmem:[#allocation5 + $0x370] sm:$0xff]
    %v233 = vld [vmem:[#allocation5 + $0x378] sm:$0xff]
    %v234 = vld [vmem:[#allocation5 + $0x380] sm:$0xff]
    %v235 = vld [vmem:[#allocation5 + $0x388] sm:$0xff]
    %v236 = vld [vmem:[#allocation5 + $0x390] sm:$0xff]
    %v237 = vld [vmem:[#allocation5 + $0x398] sm:$0xff]
    %v238 = vld [vmem:[#allocation5 + $0x3a0] sm:$0xff]
    %v239 = vld [vmem:[#allocation5 + $0x3a8] sm:$0xff]
    %v240 = vld [vmem:[#allocation5 + $0x3b0] sm:$0xff]
    %v241 = vld [vmem:[#allocation5 + $0x3b8] sm:$0xff]
    %v242 = vld [vmem:[#allocation5 + $0x3c0] sm:$0xff]
    %v243 = vld [vmem:[#allocation5 + $0x3c8] sm:$0xff]
    %v244 = vld [vmem:[#allocation5 + $0x3d0] sm:$0xff]
    %v245 = vld [vmem:[#allocation5 + $0x3d8] sm:$0xff]
    %v246 = vld [vmem:[#allocation5 + $0x3e0] sm:$0xff]
    %v247 = vld [vmem:[#allocation5 + $0x3e8] sm:$0xff]
    %v248 = vld [vmem:[#allocation5 + $0x3f0] sm:$0xff]
    %v249 = vld [vmem:[#allocation5 + $0x3f8] sm:$0xff]
    %250 = vmatprep.subr.mxu0 %v183
    %251 = vmatpush1.msra.mxu0 %v182
    %252 = vmatprep.subr.mxu0 %v179
    %253 = vmatpush1.msra.mxu0 %v178
    %254 = vmatprep.subr.mxu0 %v175
    %255 = vmatpush1.msra.mxu0 %v174
    %256 = vmatprep.subr.mxu0 %v171
    %257 = vmatpush1.msra.mxu0 %v170
    %258 = vmatprep.subr.mxu0 %v167
    %259 = vmatpush1.msra.mxu0 %v166
    %260 = vmatprep.subr.mxu0 %v163
    %261 = vmatpush1.msra.mxu0 %v162
    %262 = vmatprep.subr.mxu0 %v159
    %263 = vmatpush1.msra.mxu0 %v158
    %264 = vmatprep.subr.mxu0 %v155
    %265 = vmatpush1.msra.mxu0 %v154
    %266 = vmatprep.subr.mxu0 %v151
    %267 = vmatpush1.msra.mxu0 %v150
    %268 = vmatprep.subr.mxu0 %v147
    %269 = vmatpush1.msra.mxu0 %v146
    %270 = vmatprep.subr.mxu0 %v143
    %271 = vmatpush1.msra.mxu0 %v142
    %272 = vmatprep.subr.mxu0 %v139
    %273 = vmatpush1.msra.mxu0 %v138
    %274 = vmatprep.subr.mxu0 %v135
    %275 = vmatpush1.msra.mxu0 %v134
    %276 = vmatprep.subr.mxu0 %v131
    %277 = vmatpush1.msra.mxu0 %v130
    %278 = vmatprep.subr.mxu0 %v127
    %279 = vmatpush1.msra.mxu0 %v126
    %280 = vmatprep.subr.mxu0 %v123
    %281 = vmatpush1.msra.mxu0 %v122
    %282 = vmatprep.subr.mxu0 %v247
    %283 = vmatpush2.msra.mxu0 %v246
    %284 = vmatprep.subr.mxu0 %v243
    %285 = vmatpush2.msra.mxu0 %v242
    %286 = vmatprep.subr.mxu0 %v239
    %287 = vmatpush2.msra.mxu0 %v238
    %288 = vmatprep.subr.mxu0 %v235
    %289 = vmatpush2.msra.mxu0 %v234
    %290 = vmatprep.subr.mxu0 %v231
    %291 = vmatpush2.msra.mxu0 %v230
    %292 = vmatprep.subr.mxu0 %v227
    %293 = vmatpush2.msra.mxu0 %v226
    %294 = vmatprep.subr.mxu0 %v223
    %295 = vmatpush2.msra.mxu0 %v222
    %296 = vmatprep.subr.mxu0 %v219
    %297 = vmatpush2.msra.mxu0 %v218
    %298 = vmatprep.subr.mxu0 %v215
    %299 = vmatpush2.msra.mxu0 %v214
    %300 = vmatprep.subr.mxu0 %v211
    %301 = vmatpush2.msra.mxu0 %v210
    %302 = vmatprep.subr.mxu0 %v207
    %303 = vmatpush2.msra.mxu0 %v206
    %304 = vmatprep.subr.mxu0 %v203
    %305 = vmatpush2.msra.mxu0 %v202
    %306 = vmatprep.subr.mxu0 %v199
    %307 = vmatpush2.msra.mxu0 %v198
    %308 = vmatprep.subr.mxu0 %v195
    %309 = vmatpush2.msra.mxu0 %v194
    %310 = vmatprep.subr.mxu0 %v191
    %311 = vmatpush2.msra.mxu0 %v190
    %312 = vmatprep.subr.mxu0 %v187
    %313 = vmatpush2.msra.mxu0 %v186
    %314 = vmatprep.mubr.f32.mxu0 %v118
    %315 = vmatmul.mubr.f32.gmra.mxu0 %v117
    %v316 = vpop.f32.mrf.mxu0
    %v317 = vadd.f32 0.0, %v316
    %v318 = vpop.f32.mrf.mxu0
    %v319 = vadd.f32 0.0, %v318
    %320 = vmatprep.mubr.f32.mxu0 %v119
    %321 = vmatmul.mubr.f32.gmra.mxu0 %v118
    %v322 = vpop.f32.mrf.mxu0
    %v323 = vadd.f32 0.0, %v322
    %v324 = vpop.f32.mrf.mxu0
    %v325 = vadd.f32 0.0, %v324
    %326 = vmatprep.mubr.f32.mxu0 %v120
    %327 = vmatmul.mubr.f32.gmra.mxu0 %v119
    %v328 = vpop.f32.mrf.mxu0
    %v329 = vadd.f32 0.0, %v328
    %v330 = vpop.f32.mrf.mxu0
    %v331 = vadd.f32 0.0, %v330
    %332 = vmatprep.mubr.f32.mxu0 %v121
    %333 = vmatmul.mubr.f32.gmra.mxu0 %v120
    %v334 = vpop.f32.mrf.mxu0
    %v335 = vadd.f32 0.0, %v334
    %v336 = vpop.f32.mrf.mxu0
    %v337 = vadd.f32 0.0, %v336
    %338 = vdwg.mxu0
    %339 = vmatprep.subr.mxu0 %v185
    %340 = vmatpush1.msra.mxu0 %v184
    %341 = vmatprep.subr.mxu0 %v181
    %342 = vmatpush1.msra.mxu0 %v180
    %343 = vmatprep.subr.mxu0 %v177
    %344 = vmatpush1.msra.mxu0 %v176
    %345 = vmatprep.subr.mxu0 %v173
    %346 = vmatpush1.msra.mxu0 %v172
    %347 = vmatprep.subr.mxu0 %v169
    %348 = vmatpush1.msra.mxu0 %v168
    %349 = vmatprep.subr.mxu0 %v165
    %350 = vmatpush1.msra.mxu0 %v164
    %351 = vmatprep.subr.mxu0 %v161
    %352 = vmatpush1.msra.mxu0 %v160
    %353 = vmatprep.subr.mxu0 %v157
    %354 = vmatpush1.msra.mxu0 %v156
    %355 = vmatprep.subr.mxu0 %v153
    %356 = vmatpush1.msra.mxu0 %v152
    %357 = vmatprep.subr.mxu0 %v149
    %358 = vmatpush1.msra.mxu0 %v148
    %359 = vmatprep.subr.mxu0 %v145
    %360 = vmatpush1.msra.mxu0 %v144
    %361 = vmatprep.subr.mxu0 %v141
    %362 = vmatpush1.msra.mxu0 %v140
    %363 = vmatprep.subr.mxu0 %v137
    %364 = vmatpush1.msra.mxu0 %v136
    %365 = vmatprep.subr.mxu0 %v133
    %366 = vmatpush1.msra.mxu0 %v132
    %367 = vmatprep.subr.mxu0 %v129
    %368 = vmatpush1.msra.mxu0 %v128
    %369 = vmatprep.subr.mxu0 %v125
    %370 = vmatpush1.msra.mxu0 %v124
    %371 = vmatprep.subr.mxu0 %v249
    %372 = vmatpush2.msra.mxu0 %v248
    %373 = vmatprep.subr.mxu0 %v245
    %374 = vmatpush2.msra.mxu0 %v244
    %375 = vmatprep.subr.mxu0 %v241
    %376 = vmatpush2.msra.mxu0 %v240
    %377 = vmatprep.subr.mxu0 %v237
    %378 = vmatpush2.msra.mxu0 %v236
    %379 = vmatprep.subr.mxu0 %v233
    %380 = vmatpush2.msra.mxu0 %v232
    %381 = vmatprep.subr.mxu0 %v229
    %382 = vmatpush2.msra.mxu0 %v228
    %383 = vmatprep.subr.mxu0 %v225
    %384 = vmatpush2.msra.mxu0 %v224
    %385 = vmatprep.subr.mxu0 %v221
    %386 = vmatpush2.msra.mxu0 %v220
    %387 = vmatprep.subr.mxu0 %v217
    %388 = vmatpush2.msra.mxu0 %v216
    %389 = vmatprep.subr.mxu0 %v213
    %390 = vmatpush2.msra.mxu0 %v212
    %391 = vmatprep.subr.mxu0 %v209
    %392 = vmatpush2.msra.mxu0 %v208
    %393 = vmatprep.subr.mxu0 %v205
    %394 = vmatpush2.msra.mxu0 %v204
    %395 = vmatprep.subr.mxu0 %v201
    %396 = vmatpush2.msra.mxu0 %v200
    %397 = vmatprep.subr.mxu0 %v197
    %398 = vmatpush2.msra.mxu0 %v196
    %399 = vmatprep.subr.mxu0 %v193
    %400 = vmatpush2.msra.mxu0 %v192
    %401 = vmatprep.subr.mxu0 %v189
    %402 = vmatpush2.msra.mxu0 %v188
    %403 = vmatprep.mubr.f32.mxu0 %v118
    %404 = vmatmul.mubr.f32.gmra.mxu0 %v117
    %v405 = vpop.f32.mrf.mxu0
    %v406 = vadd.f32 0.0, %v405
    %v407 = vpop.f32.mrf.mxu0
    %v408 = vadd.f32 0.0, %v407
    %409 = vmatprep.mubr.f32.mxu0 %v119
    %410 = vmatmul.mubr.f32.gmra.mxu0 %v118
    %v411 = vpop.f32.mrf.mxu0
    %v412 = vadd.f32 0.0, %v411
    %v413 = vpop.f32.mrf.mxu0
    %v414 = vadd.f32 0.0, %v413
    %415 = vmatprep.mubr.f32.mxu0 %v120
    %416 = vmatmul.mubr.f32.gmra.mxu0 %v119
    %v417 = vpop.f32.mrf.mxu0
    %v418 = vadd.f32 0.0, %v417
    %v419 = vpop.f32.mrf.mxu0
    %v420 = vadd.f32 0.0, %v419
    %421 = vmatprep.mubr.f32.mxu0 %v121
    %422 = vmatmul.mubr.f32.gmra.mxu0 %v120
    %v423 = vpop.f32.mrf.mxu0
    %v424 = vadd.f32 0.0, %v423
    %v425 = vpop.f32.mrf.mxu0
    %v426 = vadd.f32 0.0, %v425
    %427 = vdwg.mxu0
    %v428 = vmul.f32 %v317, %v317
    %v429 = vmul.f32 %v319, %v319
    %v430 = vmul.f32 %v323, %v323
    %v431 = vmul.f32 %v325, %v325
    %v432 = vmul.f32 %v329, %v329
    %v433 = vmul.f32 %v331, %v331
    %v434 = vmul.f32 %v335, %v335
    %v435 = vmul.f32 %v337, %v337
    %v436 = vmul.f32 %v406, %v406
    %v437 = vmul.f32 %v408, %v408
    %v438 = vmul.f32 %v412, %v412
    %v439 = vmul.f32 %v414, %v414
    %v440 = vmul.f32 %v418, %v418
    %v441 = vmul.f32 %v420, %v420
    %v442 = vmul.f32 %v424, %v424
    %v443 = vmul.f32 %v426, %v426
    %v444 = vadd.f32 %v428, %v436
    %v445 = vadd.f32 %v429, %v437
    %v446 = vadd.f32 %v430, %v438
    %v447 = vadd.f32 %v431, %v439
    %v448 = vadd.f32 %v432, %v440
    %v449 = vadd.f32 %v433, %v441
    %v450 = vadd.f32 %v434, %v442
    %v451 = vadd.f32 %v435, %v443
    %v452 = vrsqrt.pop %v444
    %v453 = vmul.f32 %v444, %v452
    %vm454 = vcmp.eq.f32.partialorder %v444, inf
    %v455 = vsel %vm454, %v444, %v453
    %vm456 = vcmp.eq.f32.partialorder %v444, 0.0
    %v457 = vand.u32 %v444, 2147483648
    %v458 = vsel %vm456, %v457, %v455
    %v459 = vrsqrt.pop %v445
    %v460 = vmul.f32 %v445, %v459
    %vm461 = vcmp.eq.f32.partialorder %v445, inf
    %v462 = vsel %vm461, %v445, %v460
    %vm463 = vcmp.eq.f32.partialorder %v445, 0.0
    %v464 = vand.u32 %v445, 2147483648
    %v465 = vsel %vm463, %v464, %v462
    %v466 = vrsqrt.pop %v446
    %v467 = vmul.f32 %v446, %v466
    %vm468 = vcmp.eq.f32.partialorder %v446, inf
    %v469 = vsel %vm468, %v446, %v467
    %vm470 = vcmp.eq.f32.partialorder %v446, 0.0
    %v471 = vand.u32 %v446, 2147483648
    %v472 = vsel %vm470, %v471, %v469
    %v473 = vrsqrt.pop %v447
    %v474 = vmul.f32 %v447, %v473
    %vm475 = vcmp.eq.f32.partialorder %v447, inf
    %v476 = vsel %vm475, %v447, %v474
    %vm477 = vcmp.eq.f32.partialorder %v447, 0.0
    %v478 = vand.u32 %v447, 2147483648
    %v479 = vsel %vm477, %v478, %v476
    %v480 = vrsqrt.pop %v448
    %v481 = vmul.f32 %v448, %v480
    %vm482 = vcmp.eq.f32.partialorder %v448, inf
    %v483 = vsel %vm482, %v448, %v481
    %vm484 = vcmp.eq.f32.partialorder %v448, 0.0
    %v485 = vand.u32 %v448, 2147483648
    %v486 = vsel %vm484, %v485, %v483
    %v487 = vrsqrt.pop %v449
    %v488 = vmul.f32 %v449, %v487
    %vm489 = vcmp.eq.f32.partialorder %v449, inf
    %v490 = vsel %vm489, %v449, %v488
    %vm491 = vcmp.eq.f32.partialorder %v449, 0.0
    %v492 = vand.u32 %v449, 2147483648
    %v493 = vsel %vm491, %v492, %v490
    %v494 = vrsqrt.pop %v450
    %v495 = vmul.f32 %v450, %v494
    %vm496 = vcmp.eq.f32.partialorder %v450, inf
    %v497 = vsel %vm496, %v450, %v495
    %vm498 = vcmp.eq.f32.partialorder %v450, 0.0
    %v499 = vand.u32 %v450, 2147483648
    %v500 = vsel %vm498, %v499, %v497
    %v501 = vrsqrt.pop %v451
    %v502 = vmul.f32 %v451, %v501
    %vm503 = vcmp.eq.f32.partialorder %v451, inf
    %v504 = vsel %vm503, %v451, %v502
    %vm505 = vcmp.eq.f32.partialorder %v451, 0.0
    %v506 = vand.u32 %v451, 2147483648
    %v507 = vsel %vm505, %v506, %v504
    %v508 = vld [vmem:[#allocation7] sm:$0xff]
    %v509 = vld [vmem:[#allocation7 + $0x8] sm:$0xff]
    %v510 = vld [vmem:[#allocation7 + $0x10] sm:$0xff]
    %v511 = vld [vmem:[#allocation7 + $0x18] sm:$0xff]
    %v512 = vld [vmem:[#allocation7 + $0x20] sm:$0xff]
    %v513 = vld [vmem:[#allocation7 + $0x28] sm:$0xff]
    %v514 = vld [vmem:[#allocation7 + $0x30] sm:$0xff]
    %v515 = vld [vmem:[#allocation7 + $0x38] sm:$0xff]
    %v516 = vld [vmem:[#allocation7 + $0x40] sm:$0xff]
    %v517 = vld [vmem:[#allocation7 + $0x48] sm:$0xff]
    %v518 = vld [vmem:[#allocation7 + $0x50] sm:$0xff]
    %v519 = vld [vmem:[#allocation7 + $0x58] sm:$0xff]
    %v520 = vld [vmem:[#allocation7 + $0x60] sm:$0xff]
    %v521 = vld [vmem:[#allocation7 + $0x68] sm:$0xff]
    %v522 = vld [vmem:[#allocation7 + $0x70] sm:$0xff]
    %v523 = vld [vmem:[#allocation7 + $0x78] sm:$0xff]
    %v524 = vld [vmem:[#allocation7 + $0x80] sm:$0xff]
    %v525 = vld [vmem:[#allocation7 + $0x88] sm:$0xff]
    %v526 = vld [vmem:[#allocation7 + $0x90] sm:$0xff]
    %v527 = vld [vmem:[#allocation7 + $0x98] sm:$0xff]
    %v528 = vld [vmem:[#allocation7 + $0xa0] sm:$0xff]
    %v529 = vld [vmem:[#allocation7 + $0xa8] sm:$0xff]
    %v530 = vld [vmem:[#allocation7 + $0xb0] sm:$0xff]
    %v531 = vld [vmem:[#allocation7 + $0xb8] sm:$0xff]
    %v532 = vld [vmem:[#allocation7 + $0xc0] sm:$0xff]
    %v533 = vld [vmem:[#allocation7 + $0xc8] sm:$0xff]
    %v534 = vld [vmem:[#allocation7 + $0xd0] sm:$0xff]
    %v535 = vld [vmem:[#allocation7 + $0xd8] sm:$0xff]
    %v536 = vld [vmem:[#allocation7 + $0xe0] sm:$0xff]
    %v537 = vld [vmem:[#allocation7 + $0xe8] sm:$0xff]
    %v538 = vld [vmem:[#allocation7 + $0xf0] sm:$0xff]
    %v539 = vld [vmem:[#allocation7 + $0xf8] sm:$0xff]
    %v540 = vld [vmem:[#allocation7 + $0x100] sm:$0xff]
    %v541 = vld [vmem:[#allocation7 + $0x108] sm:$0xff]
    %v542 = vld [vmem:[#allocation7 + $0x110] sm:$0xff]
    %v543 = vld [vmem:[#allocation7 + $0x118] sm:$0xff]
    %v544 = vld [vmem:[#allocation7 + $0x120] sm:$0xff]
    %v545 = vld [vmem:[#allocation7 + $0x128] sm:$0xff]
    %v546 = vld [vmem:[#allocation7 + $0x130] sm:$0xff]
    %v547 = vld [vmem:[#allocation7 + $0x138] sm:$0xff]
    %v548 = vld [vmem:[#allocation7 + $0x140] sm:$0xff]
    %v549 = vld [vmem:[#allocation7 + $0x148] sm:$0xff]
    %v550 = vld [vmem:[#allocation7 + $0x150] sm:$0xff]
    %v551 = vld [vmem:[#allocation7 + $0x158] sm:$0xff]
    %v552 = vld [vmem:[#allocation7 + $0x160] sm:$0xff]
    %v553 = vld [vmem:[#allocation7 + $0x168] sm:$0xff]
    %v554 = vld [vmem:[#allocation7 + $0x170] sm:$0xff]
    %v555 = vld [vmem:[#allocation7 + $0x178] sm:$0xff]
    %v556 = vld [vmem:[#allocation7 + $0x180] sm:$0xff]
    %v557 = vld [vmem:[#allocation7 + $0x188] sm:$0xff]
    %v558 = vld [vmem:[#allocation7 + $0x190] sm:$0xff]
    %v559 = vld [vmem:[#allocation7 + $0x198] sm:$0xff]
    %v560 = vld [vmem:[#allocation7 + $0x1a0] sm:$0xff]
    %v561 = vld [vmem:[#allocation7 + $0x1a8] sm:$0xff]
    %v562 = vld [vmem:[#allocation7 + $0x1b0] sm:$0xff]
    %v563 = vld [vmem:[#allocation7 + $0x1b8] sm:$0xff]
    %v564 = vld [vmem:[#allocation7 + $0x1c0] sm:$0xff]
    %v565 = vld [vmem:[#allocation7 + $0x1c8] sm:$0xff]
    %v566 = vld [vmem:[#allocation7 + $0x1d0] sm:$0xff]
    %v567 = vld [vmem:[#allocation7 + $0x1d8] sm:$0xff]
    %v568 = vld [vmem:[#allocation7 + $0x1e0] sm:$0xff]
    %v569 = vld [vmem:[#allocation7 + $0x1e8] sm:$0xff]
    %v570 = vld [vmem:[#allocation7 + $0x1f0] sm:$0xff]
    %v571 = vld [vmem:[#allocation7 + $0x1f8] sm:$0xff]
    %v572 = vld [vmem:[#allocation7 + $0x200] sm:$0xff]
    %v573 = vld [vmem:[#allocation7 + $0x208] sm:$0xff]
    %v574 = vld [vmem:[#allocation7 + $0x210] sm:$0xff]
    %v575 = vld [vmem:[#allocation7 + $0x218] sm:$0xff]
    %v576 = vld [vmem:[#allocation7 + $0x220] sm:$0xff]
    %v577 = vld [vmem:[#allocation7 + $0x228] sm:$0xff]
    %v578 = vld [vmem:[#allocation7 + $0x230] sm:$0xff]
    %v579 = vld [vmem:[#allocation7 + $0x238] sm:$0xff]
    %v580 = vld [vmem:[#allocation7 + $0x240] sm:$0xff]
    %v581 = vld [vmem:[#allocation7 + $0x248] sm:$0xff]
    %v582 = vld [vmem:[#allocation7 + $0x250] sm:$0xff]
    %v583 = vld [vmem:[#allocation7 + $0x258] sm:$0xff]
    %v584 = vld [vmem:[#allocation7 + $0x260] sm:$0xff]
    %v585 = vld [vmem:[#allocation7 + $0x268] sm:$0xff]
    %v586 = vld [vmem:[#allocation7 + $0x270] sm:$0xff]
    %v587 = vld [vmem:[#allocation7 + $0x278] sm:$0xff]
    %v588 = vld [vmem:[#allocation7 + $0x280] sm:$0xff]
    %v589 = vld [vmem:[#allocation7 + $0x288] sm:$0xff]
    %v590 = vld [vmem:[#allocation7 + $0x290] sm:$0xff]
    %v591 = vld [vmem:[#allocation7 + $0x298] sm:$0xff]
    %v592 = vld [vmem:[#allocation7 + $0x2a0] sm:$0xff]
    %v593 = vld [vmem:[#allocation7 + $0x2a8] sm:$0xff]
    %v594 = vld [vmem:[#allocation7 + $0x2b0] sm:$0xff]
    %v595 = vld [vmem:[#allocation7 + $0x2b8] sm:$0xff]
    %v596 = vld [vmem:[#allocation7 + $0x2c0] sm:$0xff]
    %v597 = vld [vmem:[#allocation7 + $0x2c8] sm:$0xff]
    %v598 = vld [vmem:[#allocation7 + $0x2d0] sm:$0xff]
    %v599 = vld [vmem:[#allocation7 + $0x2d8] sm:$0xff]
    %v600 = vld [vmem:[#allocation7 + $0x2e0] sm:$0xff]
    %v601 = vld [vmem:[#allocation7 + $0x2e8] sm:$0xff]
    %v602 = vld [vmem:[#allocation7 + $0x2f0] sm:$0xff]
    %v603 = vld [vmem:[#allocation7 + $0x2f8] sm:$0xff]
    %v604 = vld [vmem:[%s3] sm:$0x1]
    %v606 = vlaneseq
    %v607 = vshrl.u32 %v606, 7
    %v608 = vsub.s32 0, %v607
    %v609 = vrot.slane %v604, %v608
    %611 = vmatprep.subr.mxu0 0.0
    %612 = vmatpush1.msra.mxu0 %v523
    %613 = vmatprep.subr.mxu0 0.0
    %614 = vmatpush1.msra.mxu0 %v522
    %615 = vmatprep.subr.mxu0 0.0
    %616 = vmatpush1.msra.mxu0 %v521
    %617 = vmatprep.subr.mxu0 0.0
    %618 = vmatpush1.msra.mxu0 %v520
    %619 = vmatprep.subr.mxu0 0.0
    %620 = vmatpush1.msra.mxu0 %v519
    %621 = vmatprep.subr.mxu0 0.0
    %622 = vmatpush1.msra.mxu0 %v518
    %623 = vmatprep.subr.mxu0 0.0
    %624 = vmatpush1.msra.mxu0 %v517
    %625 = vmatprep.subr.mxu0 0.0
    %626 = vmatpush1.msra.mxu0 %v516
    %627 = vmatprep.subr.mxu0 0.0
    %628 = vmatpush1.msra.mxu0 %v515
    %629 = vmatprep.subr.mxu0 0.0
    %630 = vmatpush1.msra.mxu0 %v514
    %631 = vmatprep.subr.mxu0 0.0
    %632 = vmatpush1.msra.mxu0 %v513
    %633 = vmatprep.subr.mxu0 0.0
    %634 = vmatpush1.msra.mxu0 %v512
    %635 = vmatprep.subr.mxu0 0.0
    %636 = vmatpush1.msra.mxu0 %v511
    %637 = vmatprep.subr.mxu0 0.0
    %638 = vmatpush1.msra.mxu0 %v510
    %639 = vmatprep.subr.mxu0 0.0
    %640 = vmatpush1.msra.mxu0 %v509
    %641 = vmatprep.subr.mxu0 0.0
    %642 = vmatpush1.msra.mxu0 %v508
    %643 = vmatprep.subr.mxu0 0.0
    %644 = vmatpush2.msra.mxu0 %v539
    %645 = vmatprep.subr.mxu0 0.0
    %646 = vmatpush2.msra.mxu0 %v538
    %647 = vmatprep.subr.mxu0 0.0
    %648 = vmatpush2.msra.mxu0 %v537
    %649 = vmatprep.subr.mxu0 0.0
    %650 = vmatpush2.msra.mxu0 %v536
    %651 = vmatprep.subr.mxu0 0.0
    %652 = vmatpush2.msra.mxu0 %v535
    %653 = vmatprep.subr.mxu0 0.0
    %654 = vmatpush2.msra.mxu0 %v534
    %655 = vmatprep.subr.mxu0 0.0
    %656 = vmatpush2.msra.mxu0 %v533
    %657 = vmatprep.subr.mxu0 0.0
    %658 = vmatpush2.msra.mxu0 %v532
    %659 = vmatprep.subr.mxu0 0.0
    %660 = vmatpush2.msra.mxu0 %v531
    %661 = vmatprep.subr.mxu0 0.0
    %662 = vmatpush2.msra.mxu0 %v530
    %663 = vmatprep.subr.mxu0 0.0
    %664 = vmatpush2.msra.mxu0 %v529
    %665 = vmatprep.subr.mxu0 0.0
    %666 = vmatpush2.msra.mxu0 %v528
    %667 = vmatprep.subr.mxu0 0.0
    %668 = vmatpush2.msra.mxu0 %v527
    %669 = vmatprep.subr.mxu0 0.0
    %670 = vmatpush2.msra.mxu0 %v526
    %671 = vmatprep.subr.mxu0 0.0
    %672 = vmatpush2.msra.mxu0 %v525
    %673 = vmatprep.subr.mxu0 0.0
    %674 = vmatpush2.msra.mxu0 %v524
    %675 = vmatprep.mubr.f32.mxu0 0.0
    %676 = vmatmul.mubr.f32.gmra.mxu0 0.0
    %v677 = vpop.f32.mrf.mxu0
    %v678 = vadd.f32 %v609, %v677
    %v679 = vpop.f32.mrf.mxu0
    %680 = vmatprep.mubr.f32.mxu0 %v465
    %681 = vmatmul.mubr.f32.gmra.mxu0 %v458
    %v682 = vpop.f32.mrf.mxu0
    %v683 = vadd.f32 %v609, %v682
    %v684 = vpop.f32.mrf.mxu0
    %685 = vmatprep.mubr.f32.mxu0 %v479
    %686 = vmatmul.mubr.f32.gmra.mxu0 %v472
    %v687 = vpop.f32.mrf.mxu0
    %v688 = vadd.f32 %v609, %v687
    %v689 = vpop.f32.mrf.mxu0
    %690 = vmatprep.mubr.f32.mxu0 %v493
    %691 = vmatmul.mubr.f32.gmra.mxu0 %v486
    %v692 = vpop.f32.mrf.mxu0
    %v693 = vadd.f32 %v609, %v692
    %v694 = vpop.f32.mrf.mxu0
    %695 = vdwg.mxu0
    %696 = vmatprep.subr.mxu0 0.0
    %697 = vmatpush1.msra.mxu0 %v555
    %698 = vmatprep.subr.mxu0 0.0
    %699 = vmatpush1.msra.mxu0 %v554
    %700 = vmatprep.subr.mxu0 0.0
    %701 = vmatpush1.msra.mxu0 %v553
    %702 = vmatprep.subr.mxu0 0.0
    %703 = vmatpush1.msra.mxu0 %v552
    %704 = vmatprep.subr.mxu0 0.0
    %705 = vmatpush1.msra.mxu0 %v551
    %706 = vmatprep.subr.mxu0 0.0
    %707 = vmatpush1.msra.mxu0 %v550
    %708 = vmatprep.subr.mxu0 0.0
    %709 = vmatpush1.msra.mxu0 %v549
    %710 = vmatprep.subr.mxu0 0.0
    %711 = vmatpush1.msra.mxu0 %v548
    %712 = vmatprep.subr.mxu0 0.0
    %713 = vmatpush1.msra.mxu0 %v547
    %714 = vmatprep.subr.mxu0 0.0
    %715 = vmatpush1.msra.mxu0 %v546
    %716 = vmatprep.subr.mxu0 0.0
    %717 = vmatpush1.msra.mxu0 %v545
    %718 = vmatprep.subr.mxu0 0.0
    %719 = vmatpush1.msra.mxu0 %v544
    %720 = vmatprep.subr.mxu0 0.0
    %721 = vmatpush1.msra.mxu0 %v543
    %722 = vmatprep.subr.mxu0 0.0
    %723 = vmatpush1.msra.mxu0 %v542
    %724 = vmatprep.subr.mxu0 0.0
    %725 = vmatpush1.msra.mxu0 %v541
    %726 = vmatprep.subr.mxu0 0.0
    %727 = vmatpush1.msra.mxu0 %v540
    %728 = vmatprep.subr.mxu0 0.0
    %729 = vmatpush2.msra.mxu0 %v571
    %730 = vmatprep.subr.mxu0 0.0
    %731 = vmatpush2.msra.mxu0 %v570
    %732 = vmatprep.subr.mxu0 0.0
    %733 = vmatpush2.msra.mxu0 %v569
    %734 = vmatprep.subr.mxu0 0.0
    %735 = vmatpush2.msra.mxu0 %v568
    %736 = vmatprep.subr.mxu0 0.0
    %737 = vmatpush2.msra.mxu0 %v567
    %738 = vmatprep.subr.mxu0 0.0
    %739 = vmatpush2.msra.mxu0 %v566
    %740 = vmatprep.subr.mxu0 0.0
    %741 = vmatpush2.msra.mxu0 %v565
    %742 = vmatprep.subr.mxu0 0.0
    %743 = vmatpush2.msra.mxu0 %v564
    %744 = vmatprep.subr.mxu0 0.0
    %745 = vmatpush2.msra.mxu0 %v563
    %746 = vmatprep.subr.mxu0 0.0
    %747 = vmatpush2.msra.mxu0 %v562
    %748 = vmatprep.subr.mxu0 0.0
    %749 = vmatpush2.msra.mxu0 %v561
    %750 = vmatprep.subr.mxu0 0.0
    %751 = vmatpush2.msra.mxu0 %v560
    %752 = vmatprep.subr.mxu0 0.0
    %753 = vmatpush2.msra.mxu0 %v559
    %754 = vmatprep.subr.mxu0 0.0
    %755 = vmatpush2.msra.mxu0 %v558
    %756 = vmatprep.subr.mxu0 0.0
    %757 = vmatpush2.msra.mxu0 %v557
    %758 = vmatprep.subr.mxu0 0.0
    %759 = vmatpush2.msra.mxu0 %v556
    %760 = vmatprep.mubr.f32.mxu0 %v465
    %761 = vmatmul.mubr.f32.gmra.mxu0 %v458
    %v762 = vpop.f32.mrf.mxu0
    %v763 = vadd.f32 %v678, %v762
    %v764 = vpop.f32.mrf.mxu0
    %765 = vmatprep.mubr.f32.mxu0 %v479
    %766 = vmatmul.mubr.f32.gmra.mxu0 %v472
    %v767 = vpop.f32.mrf.mxu0
    %v768 = vadd.f32 %v683, %v767
    %v769 = vpop.f32.mrf.mxu0
    %770 = vmatprep.mubr.f32.mxu0 %v493
    %771 = vmatmul.mubr.f32.gmra.mxu0 %v486
    %v772 = vpop.f32.mrf.mxu0
    %v773 = vadd.f32 %v688, %v772
    %v774 = vpop.f32.mrf.mxu0
    %775 = vmatprep.mubr.f32.mxu0 %v507
    %776 = vmatmul.mubr.f32.gmra.mxu0 %v500
    %v777 = vpop.f32.mrf.mxu0
    %v778 = vadd.f32 %v693, %v777
    %v779 = vpop.f32.mrf.mxu0
    %780 = vdwg.mxu0
    %781 = vmatprep.subr.mxu0 0.0
    %782 = vmatpush1.msra.mxu0 %v587
    %783 = vmatprep.subr.mxu0 0.0
    %784 = vmatpush1.msra.mxu0 %v586
    %785 = vmatprep.subr.mxu0 0.0
    %786 = vmatpush1.msra.mxu0 %v585
    %787 = vmatprep.subr.mxu0 0.0
    %788 = vmatpush1.msra.mxu0 %v584
    %789 = vmatprep.subr.mxu0 0.0
    %790 = vmatpush1.msra.mxu0 %v583
    %791 = vmatprep.subr.mxu0 0.0
    %792 = vmatpush1.msra.mxu0 %v582
    %793 = vmatprep.subr.mxu0 0.0
    %794 = vmatpush1.msra.mxu0 %v581
    %795 = vmatprep.subr.mxu0 0.0
    %796 = vmatpush1.msra.mxu0 %v580
    %797 = vmatprep.subr.mxu0 0.0
    %798 = vmatpush1.msra.mxu0 %v579
    %799 = vmatprep.subr.mxu0 0.0
    %800 = vmatpush1.msra.mxu0 %v578
    %801 = vmatprep.subr.mxu0 0.0
    %802 = vmatpush1.msra.mxu0 %v577
    %803 = vmatprep.subr.mxu0 0.0
    %804 = vmatpush1.msra.mxu0 %v576
    %805 = vmatprep.subr.mxu0 0.0
    %806 = vmatpush1.msra.mxu0 %v575
    %807 = vmatprep.subr.mxu0 0.0
    %808 = vmatpush1.msra.mxu0 %v574
    %809 = vmatprep.subr.mxu0 0.0
    %810 = vmatpush1.msra.mxu0 %v573
    %811 = vmatprep.subr.mxu0 0.0
    %812 = vmatpush1.msra.mxu0 %v572
    %813 = vmatprep.subr.mxu0 0.0
    %814 = vmatpush2.msra.mxu0 %v603
    %815 = vmatprep.subr.mxu0 0.0
    %816 = vmatpush2.msra.mxu0 %v602
    %817 = vmatprep.subr.mxu0 0.0
    %818 = vmatpush2.msra.mxu0 %v601
    %819 = vmatprep.subr.mxu0 0.0
    %820 = vmatpush2.msra.mxu0 %v600
    %821 = vmatprep.subr.mxu0 0.0
    %822 = vmatpush2.msra.mxu0 %v599
    %823 = vmatprep.subr.mxu0 0.0
    %824 = vmatpush2.msra.mxu0 %v598
    %825 = vmatprep.subr.mxu0 0.0
    %826 = vmatpush2.msra.mxu0 %v597
    %827 = vmatprep.subr.mxu0 0.0
    %828 = vmatpush2.msra.mxu0 %v596
    %829 = vmatprep.subr.mxu0 0.0
    %830 = vmatpush2.msra.mxu0 %v595
    %831 = vmatprep.subr.mxu0 0.0
    %832 = vmatpush2.msra.mxu0 %v594
    %833 = vmatprep.subr.mxu0 0.0
    %834 = vmatpush2.msra.mxu0 %v593
    %835 = vmatprep.subr.mxu0 0.0
    %836 = vmatpush2.msra.mxu0 %v592
    %837 = vmatprep.subr.mxu0 0.0
    %838 = vmatpush2.msra.mxu0 %v591
    %839 = vmatprep.subr.mxu0 0.0
    %840 = vmatpush2.msra.mxu0 %v590
    %841 = vmatprep.subr.mxu0 0.0
    %842 = vmatpush2.msra.mxu0 %v589
    %843 = vmatprep.subr.mxu0 0.0
    %844 = vmatpush2.msra.mxu0 %v588
    %845 = vmatprep.mubr.f32.mxu0 %v479
    %846 = vmatmul.mubr.f32.gmra.mxu0 %v472
    %v847 = vpop.f32.mrf.mxu0
    %v848 = vadd.f32 %v763, %v847
    %v849 = vpop.f32.mrf.mxu0
    %850 = vmatprep.mubr.f32.mxu0 %v493
    %851 = vmatmul.mubr.f32.gmra.mxu0 %v486
    %v852 = vpop.f32.mrf.mxu0
    %v853 = vadd.f32 %v768, %v852
    %v854 = vpop.f32.mrf.mxu0
    %855 = vmatprep.mubr.f32.mxu0 %v507
    %856 = vmatmul.mubr.f32.gmra.mxu0 %v500
    %v857 = vpop.f32.mrf.mxu0
    %v858 = vadd.f32 %v773, %v857
    %v859 = vpop.f32.mrf.mxu0
    %860 = vmatprep.mubr.f32.mxu0 0.0
    %861 = vmatmul.mubr.f32.gmra.mxu0 0.0
    %v862 = vpop.f32.mrf.mxu0
    %v863 = vadd.f32 %v778, %v862
    %v864 = vpop.f32.mrf.mxu0
    %865 = vdwg.mxu0
    %v866 = vmax.f32 %v848, 0.0
    %v867 = vmax.f32 %v853, 0.0
    %v868 = vmax.f32 %v858, 0.0
    %v869 = vmax.f32 %v863, 0.0
    %v870 = vld [vmem:[#allocation8] sm:$0xff]
    %v871 = vld [vmem:[#allocation8 + $0x8] sm:$0xff]
    %v872 = vld [vmem:[#allocation8 + $0x10] sm:$0xff]
    %v873 = vld [vmem:[#allocation8 + $0x18] sm:$0xff]
    %v874 = vld [vmem:[#allocation8 + $0x20] sm:$0xff]
    %v875 = vld [vmem:[#allocation8 + $0x28] sm:$0xff]
    %v876 = vld [vmem:[#allocation8 + $0x30] sm:$0xff]
    %v877 = vld [vmem:[#allocation8 + $0x38] sm:$0xff]
    %v878 = vld [vmem:[#allocation8 + $0x40] sm:$0xff]
    %v879 = vld [vmem:[#allocation8 + $0x48] sm:$0xff]
    %v880 = vld [vmem:[#allocation8 + $0x50] sm:$0xff]
    %v881 = vld [vmem:[#allocation8 + $0x58] sm:$0xff]
    %v882 = vld [vmem:[#allocation8 + $0x60] sm:$0xff]
    %v883 = vld [vmem:[#allocation8 + $0x68] sm:$0xff]
    %v884 = vld [vmem:[#allocation8 + $0x70] sm:$0xff]
    %v885 = vld [vmem:[#allocation8 + $0x78] sm:$0xff]
    %v886 = vld [vmem:[#allocation8 + $0x80] sm:$0xff]
    %v887 = vld [vmem:[#allocation8 + $0x88] sm:$0xff]
    %v888 = vld [vmem:[#allocation8 + $0x90] sm:$0xff]
    %v889 = vld [vmem:[#allocation8 + $0x98] sm:$0xff]
    %v890 = vld [vmem:[#allocation8 + $0xa0] sm:$0xff]
    %v891 = vld [vmem:[#allocation8 + $0xa8] sm:$0xff]
    %v892 = vld [vmem:[#allocation8 + $0xb0] sm:$0xff]
    %v893 = vld [vmem:[#allocation8 + $0xb8] sm:$0xff]
    %v894 = vld [vmem:[#allocation8 + $0xc0] sm:$0xff]
    %v895 = vld [vmem:[#allocation8 + $0xc8] sm:$0xff]
    %v896 = vld [vmem:[#allocation8 + $0xd0] sm:$0xff]
    %v897 = vld [vmem:[#allocation8 + $0xd8] sm:$0xff]
    %v898 = vld [vmem:[#allocation8 + $0xe0] sm:$0xff]
    %v899 = vld [vmem:[#allocation8 + $0xe8] sm:$0xff]
    %v900 = vld [vmem:[#allocation8 + $0xf0] sm:$0xff]
    %v901 = vld [vmem:[#allocation8 + $0xf8] sm:$0xff]
    %v902 = vld [vmem:[#allocation8 + $0x100] sm:$0xff]
    %v903 = vld [vmem:[#allocation8 + $0x108] sm:$0xff]
    %v904 = vld [vmem:[#allocation8 + $0x110] sm:$0xff]
    %v905 = vld [vmem:[#allocation8 + $0x118] sm:$0xff]
    %v906 = vld [vmem:[#allocation8 + $0x120] sm:$0xff]
    %v907 = vld [vmem:[#allocation8 + $0x128] sm:$0xff]
    %v908 = vld [vmem:[#allocation8 + $0x130] sm:$0xff]
    %v909 = vld [vmem:[#allocation8 + $0x138] sm:$0xff]
    %v910 = vld [vmem:[#allocation8 + $0x140] sm:$0xff]
    %v911 = vld [vmem:[#allocation8 + $0x148] sm:$0xff]
    %v912 = vld [vmem:[#allocation8 + $0x150] sm:$0xff]
    %v913 = vld [vmem:[#allocation8 + $0x158] sm:$0xff]
    %v914 = vld [vmem:[#allocation8 + $0x160] sm:$0xff]
    %v915 = vld [vmem:[#allocation8 + $0x168] sm:$0xff]
    %v916 = vld [vmem:[#allocation8 + $0x170] sm:$0xff]
    %v917 = vld [vmem:[#allocation8 + $0x178] sm:$0xff]
    %v918 = vld [vmem:[#allocation8 + $0x180] sm:$0xff]
    %v919 = vld [vmem:[#allocation8 + $0x188] sm:$0xff]
    %v920 = vld [vmem:[#allocation8 + $0x190] sm:$0xff]
    %v921 = vld [vmem:[#allocation8 + $0x198] sm:$0xff]
    %v922 = vld [vmem:[#allocation8 + $0x1a0] sm:$0xff]
    %v923 = vld [vmem:[#allocation8 + $0x1a8] sm:$0xff]
    %v924 = vld [vmem:[#allocation8 + $0x1b0] sm:$0xff]
    %v925 = vld [vmem:[#allocation8 + $0x1b8] sm:$0xff]
    %v926 = vld [vmem:[#allocation8 + $0x1c0] sm:$0xff]
    %v927 = vld [vmem:[#allocation8 + $0x1c8] sm:$0xff]
    %v928 = vld [vmem:[#allocation8 + $0x1d0] sm:$0xff]
    %v929 = vld [vmem:[#allocation8 + $0x1d8] sm:$0xff]
    %v930 = vld [vmem:[#allocation8 + $0x1e0] sm:$0xff]
    %v931 = vld [vmem:[#allocation8 + $0x1e8] sm:$0xff]
    %v932 = vld [vmem:[#allocation8 + $0x1f0] sm:$0xff]
    %v933 = vld [vmem:[#allocation8 + $0x1f8] sm:$0xff]
    %v934 = vld [vmem:[#allocation8 + $0x200] sm:$0xff]
    %v935 = vld [vmem:[#allocation8 + $0x208] sm:$0xff]
    %v936 = vld [vmem:[#allocation8 + $0x210] sm:$0xff]
    %v937 = vld [vmem:[#allocation8 + $0x218] sm:$0xff]
    %v938 = vld [vmem:[#allocation8 + $0x220] sm:$0xff]
    %v939 = vld [vmem:[#allocation8 + $0x228] sm:$0xff]
    %v940 = vld [vmem:[#allocation8 + $0x230] sm:$0xff]
    %v941 = vld [vmem:[#allocation8 + $0x238] sm:$0xff]
    %v942 = vld [vmem:[#allocation8 + $0x240] sm:$0xff]
    %v943 = vld [vmem:[#allocation8 + $0x248] sm:$0xff]
    %v944 = vld [vmem:[#allocation8 + $0x250] sm:$0xff]
    %v945 = vld [vmem:[#allocation8 + $0x258] sm:$0xff]
    %v946 = vld [vmem:[#allocation8 + $0x260] sm:$0xff]
    %v947 = vld [vmem:[#allocation8 + $0x268] sm:$0xff]
    %v948 = vld [vmem:[#allocation8 + $0x270] sm:$0xff]
    %v949 = vld [vmem:[#allocation8 + $0x278] sm:$0xff]
    %v950 = vld [vmem:[%s5] sm:$0x1]
    %v952 = vlaneseq
    %v953 = vshrl.u32 %v952, 7
    %v954 = vsub.s32 0, %v953
    %v955 = vrot.slane %v950, %v954
    %957 = vmatprep.subr.mxu0 0.0
    %958 = vmatpush1.msra.mxu0 %v885
    %959 = vmatprep.subr.mxu0 0.0
    %960 = vmatpush1.msra.mxu0 %v884
    %961 = vmatprep.subr.mxu0 0.0
    %962 = vmatpush1.msra.mxu0 %v883
    %963 = vmatprep.subr.mxu0 0.0
    %964 = vmatpush1.msra.mxu0 %v882
    %965 = vmatprep.subr.mxu0 0.0
    %966 = vmatpush1.msra.mxu0 %v881
    %967 = vmatprep.subr.mxu0 0.0
    %968 = vmatpush1.msra.mxu0 %v880
    %969 = vmatprep.subr.mxu0 0.0
    %970 = vmatpush1.msra.mxu0 %v879
    %971 = vmatprep.subr.mxu0 0.0
    %972 = vmatpush1.msra.mxu0 %v878
    %973 = vmatprep.subr.mxu0 0.0
    %974 = vmatpush1.msra.mxu0 %v877
    %975 = vmatprep.subr.mxu0 0.0
    %976 = vmatpush1.msra.mxu0 %v876
    %977 = vmatprep.subr.mxu0 0.0
    %978 = vmatpush1.msra.mxu0 %v875
    %979 = vmatprep.subr.mxu0 0.0
    %980 = vmatpush1.msra.mxu0 %v874
    %981 = vmatprep.subr.mxu0 0.0
    %982 = vmatpush1.msra.mxu0 %v873
    %983 = vmatprep.subr.mxu0 0.0
    %984 = vmatpush1.msra.mxu0 %v872
    %985 = vmatprep.subr.mxu0 0.0
    %986 = vmatpush1.msra.mxu0 %v871
    %987 = vmatprep.subr.mxu0 0.0
    %988 = vmatpush1.msra.mxu0 %v870
    %989 = vmatprep.subr.mxu0 0.0
    %990 = vmatpush2.msra.mxu0 %v901
    %991 = vmatprep.subr.mxu0 0.0
    %992 = vmatpush2.msra.mxu0 %v900
    %993 = vmatprep.subr.mxu0 0.0
    %994 = vmatpush2.msra.mxu0 %v899
    %995 = vmatprep.subr.mxu0 0.0
    %996 = vmatpush2.msra.mxu0 %v898
    %997 = vmatprep.subr.mxu0 0.0
    %998 = vmatpush2.msra.mxu0 %v897
    %999 = vmatprep.subr.mxu0 0.0
    %1000 = vmatpush2.msra.mxu0 %v896
    %1001 = vmatprep.subr.mxu0 0.0
    %1002 = vmatpush2.msra.mxu0 %v895
    %1003 = vmatprep.subr.mxu0 0.0
    %1004 = vmatpush2.msra.mxu0 %v894
    %1005 = vmatprep.subr.mxu0 0.0
    %1006 = vmatpush2.msra.mxu0 %v893
    %1007 = vmatprep.subr.mxu0 0.0
    %1008 = vmatpush2.msra.mxu0 %v892
    %1009 = vmatprep.subr.mxu0 0.0
    %1010 = vmatpush2.msra.mxu0 %v891
    %1011 = vmatprep.subr.mxu0 0.0
    %1012 = vmatpush2.msra.mxu0 %v890
    %1013 = vmatprep.subr.mxu0 0.0
    %1014 = vmatpush2.msra.mxu0 %v889
    %1015 = vmatprep.subr.mxu0 0.0
    %1016 = vmatpush2.msra.mxu0 %v888
    %1017 = vmatprep.subr.mxu0 0.0
    %1018 = vmatpush2.msra.mxu0 %v887
    %1019 = vmatprep.subr.mxu0 0.0
    %1020 = vmatpush2.msra.mxu0 %v886
    %1021 = vmatprep.mubr.f32.mxu0 %v866
    %1022 = vmatmul.mubr.f32.gmra.mxu0 0.0
    %v1023 = vpop.f32.mrf.mxu0
    %v1024 = vadd.f32 %v955, %v1023
    %v1025 = vpop.f32.mrf.mxu0
    %1026 = vdwg.mxu0
    %1027 = vmatprep.subr.mxu0 0.0
    %1028 = vmatpush1.msra.mxu0 %v917
    %1029 = vmatprep.subr.mxu0 0.0
    %1030 = vmatpush1.msra.mxu0 %v916
    %1031 = vmatprep.subr.mxu0 0.0
    %1032 = vmatpush1.msra.mxu0 %v915
    %1033 = vmatprep.subr.mxu0 0.0
    %1034 = vmatpush1.msra.mxu0 %v914
    %1035 = vmatprep.subr.mxu0 0.0
    %1036 = vmatpush1.msra.mxu0 %v913
    %1037 = vmatprep.subr.mxu0 0.0
    %1038 = vmatpush1.msra.mxu0 %v912
    %1039 = vmatprep.subr.mxu0 0.0
    %1040 = vmatpush1.msra.mxu0 %v911
    %1041 = vmatprep.subr.mxu0 0.0
    %1042 = vmatpush1.msra.mxu0 %v910
    %1043 = vmatprep.subr.mxu0 0.0
    %1044 = vmatpush1.msra.mxu0 %v909
    %1045 = vmatprep.subr.mxu0 0.0
    %1046 = vmatpush1.msra.mxu0 %v908
    %1047 = vmatprep.subr.mxu0 0.0
    %1048 = vmatpush1.msra.mxu0 %v907
    %1049 = vmatprep.subr.mxu0 0.0
    %1050 = vmatpush1.msra.mxu0 %v906
    %1051 = vmatprep.subr.mxu0 0.0
    %1052 = vmatpush1.msra.mxu0 %v905
    %1053 = vmatprep.subr.mxu0 0.0
    %1054 = vmatpush1.msra.mxu0 %v904
    %1055 = vmatprep.subr.mxu0 0.0
    %1056 = vmatpush1.msra.mxu0 %v903
    %1057 = vmatprep.subr.mxu0 0.0
    %1058 = vmatpush1.msra.mxu0 %v902
    %1059 = vmatprep.subr.mxu0 0.0
    %1060 = vmatpush2.msra.mxu0 %v933
    %1061 = vmatprep.subr.mxu0 0.0
    %1062 = vmatpush2.msra.mxu0 %v932
    %1063 = vmatprep.subr.mxu0 0.0
    %1064 = vmatpush2.msra.mxu0 %v931
    %1065 = vmatprep.subr.mxu0 0.0
    %1066 = vmatpush2.msra.mxu0 %v930
    %1067 = vmatprep.subr.mxu0 0.0
    %1068 = vmatpush2.msra.mxu0 %v929
    %1069 = vmatprep.subr.mxu0 0.0
    %1070 = vmatpush2.msra.mxu0 %v928
    %1071 = vmatprep.subr.mxu0 0.0
    %1072 = vmatpush2.msra.mxu0 %v927
    %1073 = vmatprep.subr.mxu0 0.0
    %1074 = vmatpush2.msra.mxu0 %v926
    %1075 = vmatprep.subr.mxu0 0.0
    %1076 = vmatpush2.msra.mxu0 %v925
    %1077 = vmatprep.subr.mxu0 0.0
    %1078 = vmatpush2.msra.mxu0 %v924
    %1079 = vmatprep.subr.mxu0 0.0
    %1080 = vmatpush2.msra.mxu0 %v923
    %1081 = vmatprep.subr.mxu0 0.0
    %1082 = vmatpush2.msra.mxu0 %v922
    %1083 = vmatprep.subr.mxu0 0.0
    %1084 = vmatpush2.msra.mxu0 %v921
    %1085 = vmatprep.subr.mxu0 0.0
    %1086 = vmatpush2.msra.mxu0 %v920
    %1087 = vmatprep.subr.mxu0 0.0
    %1088 = vmatpush2.msra.mxu0 %v919
    %1089 = vmatprep.subr.mxu0 0.0
    %1090 = vmatpush2.msra.mxu0 %v918
    %1091 = vmatprep.mubr.f32.mxu0 %v868
    %1092 = vmatmul.mubr.f32.gmra.mxu0 %v867
    %v1093 = vpop.f32.mrf.mxu0
    %v1094 = vadd.f32 %v1024, %v1093
    %v1095 = vpop.f32.mrf.mxu0
    %1096 = vdwg.mxu0
    %1097 = vmatprep.subr.mxu0 0.0
    %1098 = vmatpush1.msra.mxu0 %v949
    %1099 = vmatprep.subr.mxu0 0.0
    %1100 = vmatpush1.msra.mxu0 %v948
    %1101 = vmatprep.subr.mxu0 0.0
    %1102 = vmatpush1.msra.mxu0 %v947
    %1103 = vmatprep.subr.mxu0 0.0
    %1104 = vmatpush1.msra.mxu0 %v946
    %1105 = vmatprep.subr.mxu0 0.0
    %1106 = vmatpush1.msra.mxu0 %v945
    %1107 = vmatprep.subr.mxu0 0.0
    %1108 = vmatpush1.msra.mxu0 %v944
    %1109 = vmatprep.subr.mxu0 0.0
    %1110 = vmatpush1.msra.mxu0 %v943
    %1111 = vmatprep.subr.mxu0 0.0
    %1112 = vmatpush1.msra.mxu0 %v942
    %1113 = vmatprep.subr.mxu0 0.0
    %1114 = vmatpush1.msra.mxu0 %v941
    %1115 = vmatprep.subr.mxu0 0.0
    %1116 = vmatpush1.msra.mxu0 %v940
    %1117 = vmatprep.subr.mxu0 0.0
    %1118 = vmatpush1.msra.mxu0 %v939
    %1119 = vmatprep.subr.mxu0 0.0
    %1120 = vmatpush1.msra.mxu0 %v938
    %1121 = vmatprep.subr.mxu0 0.0
    %1122 = vmatpush1.msra.mxu0 %v937
    %1123 = vmatprep.subr.mxu0 0.0
    %1124 = vmatpush1.msra.mxu0 %v936
    %1125 = vmatprep.subr.mxu0 0.0
    %1126 = vmatpush1.msra.mxu0 %v935
    %1127 = vmatprep.subr.mxu0 0.0
    %1128 = vmatpush1.msra.mxu0 %v934
    %1129 = vmatprep.subr.mxu0 0.0
    %1130 = vmatpush2.msra.mxu0 0.0
    %1131 = vmatprep.subr.mxu0 0.0
    %1132 = vmatpush2.msra.mxu0 0.0
    %1133 = vmatprep.subr.mxu0 0.0
    %1134 = vmatpush2.msra.mxu0 0.0
    %1135 = vmatprep.subr.mxu0 0.0
    %1136 = vmatpush2.msra.mxu0 0.0
    %1137 = vmatprep.subr.mxu0 0.0
    %1138 = vmatpush2.msra.mxu0 0.0
    %1139 = vmatprep.subr.mxu0 0.0
    %1140 = vmatpush2.msra.mxu0 0.0
    %1141 = vmatprep.subr.mxu0 0.0
    %1142 = vmatpush2.msra.mxu0 0.0
    %1143 = vmatprep.subr.mxu0 0.0
    %1144 = vmatpush2.msra.mxu0 0.0
    %1145 = vmatprep.subr.mxu0 0.0
    %1146 = vmatpush2.msra.mxu0 0.0
    %1147 = vmatprep.subr.mxu0 0.0
    %1148 = vmatpush2.msra.mxu0 0.0
    %1149 = vmatprep.subr.mxu0 0.0
    %1150 = vmatpush2.msra.mxu0 0.0
    %1151 = vmatprep.subr.mxu0 0.0
    %1152 = vmatpush2.msra.mxu0 0.0
    %1153 = vmatprep.subr.mxu0 0.0
    %1154 = vmatpush2.msra.mxu0 0.0
    %1155 = vmatprep.subr.mxu0 0.0
    %1156 = vmatpush2.msra.mxu0 0.0
    %1157 = vmatprep.subr.mxu0 0.0
    %1158 = vmatpush2.msra.mxu0 0.0
    %1159 = vmatprep.subr.mxu0 0.0
    %1160 = vmatpush2.msra.mxu0 0.0
    %1161 = vmatprep.mubr.f32.mxu0 0.0
    %1162 = vmatmul.mubr.f32.gmra.mxu0 %v869
    %v1163 = vpop.f32.mrf.mxu0
    %v1164 = vadd.f32 %v1094, %v1163
    %v1165 = vpop.f32.mrf.mxu0
    %1166 = vdwg.mxu0
    %v1167 = vmax.f32 %v1164, 0.0
    %v1168 = vld [vmem:[%s6] sm:$0xff]
    %v1169 = vld [vmem:[%s6 + $0x8] sm:$0xff]
    %v1170 = vld [vmem:[%s6 + $0x10] sm:$0xff]
    %v1171 = vld [vmem:[%s6 + $0x18] sm:$0xff]
    %v1172 = vld [vmem:[%s6 + $0x20] sm:$0xff]
    %v1173 = vld [vmem:[%s6 + $0x28] sm:$0xff]
    %v1174 = vld [vmem:[%s6 + $0x30] sm:$0xff]
    %v1175 = vld [vmem:[%s6 + $0x38] sm:$0xff]
    %v1176 = vld [vmem:[%s6 + $0x40] sm:$0xff]
    %v1177 = vld [vmem:[%s6 + $0x48] sm:$0xff]
    %v1178 = vld [vmem:[%s6 + $0x50] sm:$0xff]
    %v1179 = vld [vmem:[%s6 + $0x58] sm:$0xff]
    %v1180 = vld [vmem:[%s6 + $0x60] sm:$0xff]
    %v1181 = vld [vmem:[%s6 + $0x68] sm:$0xff]
    %v1182 = vld [vmem:[%s6 + $0x70] sm:$0xff]
    %v1183 = vld [vmem:[%s6 + $0x78] sm:$0xff]
    %v1184 = vld [vmem:[%s7] sm:$0x1]
    %v1186 = vlaneseq
    %v1187 = vshrl.u32 %v1186, 7
    %v1188 = vsub.s32 0, %v1187
    %v1189 = vrot.slane %v1184, %v1188
    %1191 = vmatprep.subr.mxu0 0.0
    %1192 = vmatpush1.msra.mxu0 %v1183
    %1193 = vmatprep.subr.mxu0 0.0
    %1194 = vmatpush1.msra.mxu0 %v1182
    %1195 = vmatprep.subr.mxu0 0.0
    %1196 = vmatpush1.msra.mxu0 %v1181
    %1197 = vmatprep.subr.mxu0 0.0
    %1198 = vmatpush1.msra.mxu0 %v1180
    %1199 = vmatprep.subr.mxu0 0.0
    %1200 = vmatpush1.msra.mxu0 %v1179
    %1201 = vmatprep.subr.mxu0 0.0
    %1202 = vmatpush1.msra.mxu0 %v1178
    %1203 = vmatprep.subr.mxu0 0.0
    %1204 = vmatpush1.msra.mxu0 %v1177
    %1205 = vmatprep.subr.mxu0 0.0
    %1206 = vmatpush1.msra.mxu0 %v1176
    %1207 = vmatprep.subr.mxu0 0.0
    %1208 = vmatpush1.msra.mxu0 %v1175
    %1209 = vmatprep.subr.mxu0 0.0
    %1210 = vmatpush1.msra.mxu0 %v1174
    %1211 = vmatprep.subr.mxu0 0.0
    %1212 = vmatpush1.msra.mxu0 %v1173
    %1213 = vmatprep.subr.mxu0 0.0
    %1214 = vmatpush1.msra.mxu0 %v1172
    %1215 = vmatprep.subr.mxu0 0.0
    %1216 = vmatpush1.msra.mxu0 %v1171
    %1217 = vmatprep.subr.mxu0 0.0
    %1218 = vmatpush1.msra.mxu0 %v1170
    %1219 = vmatprep.subr.mxu0 0.0
    %1220 = vmatpush1.msra.mxu0 %v1169
    %1221 = vmatprep.subr.mxu0 0.0
    %1222 = vmatpush1.msra.mxu0 %v1168
    %1223 = vmatprep.subr.mxu0 0.0
    %1224 = vmatpush2.msra.mxu0 0.0
    %1225 = vmatprep.subr.mxu0 0.0
    %1226 = vmatpush2.msra.mxu0 0.0
    %1227 = vmatprep.subr.mxu0 0.0
    %1228 = vmatpush2.msra.mxu0 0.0
    %1229 = vmatprep.subr.mxu0 0.0
    %1230 = vmatpush2.msra.mxu0 0.0
    %1231 = vmatprep.subr.mxu0 0.0
    %1232 = vmatpush2.msra.mxu0 0.0
    %1233 = vmatprep.subr.mxu0 0.0
    %1234 = vmatpush2.msra.mxu0 0.0
    %1235 = vmatprep.subr.mxu0 0.0
    %1236 = vmatpush2.msra.mxu0 0.0
    %1237 = vmatprep.subr.mxu0 0.0
    %1238 = vmatpush2.msra.mxu0 0.0
    %1239 = vmatprep.subr.mxu0 0.0
    %1240 = vmatpush2.msra.mxu0 0.0
    %1241 = vmatprep.subr.mxu0 0.0
    %1242 = vmatpush2.msra.mxu0 0.0
    %1243 = vmatprep.subr.mxu0 0.0
    %1244 = vmatpush2.msra.mxu0 0.0
    %1245 = vmatprep.subr.mxu0 0.0
    %1246 = vmatpush2.msra.mxu0 0.0
    %1247 = vmatprep.subr.mxu0 0.0
    %1248 = vmatpush2.msra.mxu0 0.0
    %1249 = vmatprep.subr.mxu0 0.0
    %1250 = vmatpush2.msra.mxu0 0.0
    %1251 = vmatprep.subr.mxu0 0.0
    %1252 = vmatpush2.msra.mxu0 0.0
    %1253 = vmatprep.subr.mxu0 0.0
    %1254 = vmatpush2.msra.mxu0 0.0
    %1255 = vmatprep.mubr.f32.mxu0 0.0
    %1256 = vmatmul.mubr.f32.gmra.mxu0 %v1167
    %v1257 = vpop.f32.mrf.mxu0
    %v1258 = vadd.f32 %v1189, %v1257
    %v1259 = vpop.f32.mrf.mxu0
    %1260 = vdwg.mxu0
    %v1261 = vmax.f32 %v1258, 0.0
    %v1262 = vld [vmem:[%s8] sm:$0xff]
    %v1263 = vld [vmem:[%s8 + $0x8] sm:$0xff]
    %v1264 = vld [vmem:[%s8 + $0x10] sm:$0xff]
    %v1265 = vld [vmem:[%s8 + $0x18] sm:$0xff]
    %v1266 = vld [vmem:[%s8 + $0x20] sm:$0xff]
    %v1267 = vld [vmem:[%s8 + $0x28] sm:$0xff]
    %v1268 = vld [vmem:[%s8 + $0x30] sm:$0xff]
    %v1269 = vld [vmem:[%s8 + $0x38] sm:$0xff]
    %v1270 = vld [vmem:[%s9] sm:$0x1]
    %v1272 = vlaneseq
    %v1273 = vshrl.u32 %v1272, 7
    %v1274 = vsub.s32 0, %v1273
    %v1275 = vrot.slane %v1270, %v1274
    %vm1277 = vcmask 523264
    %v1279 = vsel %vm1277, %v1261, 0
    %1281 = vmatprep.subr.mxu0 0.0
    %1282 = vmatpush1.msra.mxu0 0.0
    %1283 = vmatprep.subr.mxu0 0.0
    %1284 = vmatpush1.msra.mxu0 0.0
    %1285 = vmatprep.subr.mxu0 0.0
    %1286 = vmatpush1.msra.mxu0 0.0
    %1287 = vmatprep.subr.mxu0 0.0
    %1288 = vmatpush1.msra.mxu0 0.0
    %1289 = vmatprep.subr.mxu0 0.0
    %1290 = vmatpush1.msra.mxu0 0.0
    %1291 = vmatprep.subr.mxu0 0.0
    %1292 = vmatpush1.msra.mxu0 0.0
    %1293 = vmatprep.subr.mxu0 0.0
    %1294 = vmatpush1.msra.mxu0 0.0
    %1295 = vmatprep.subr.mxu0 0.0
    %1296 = vmatpush1.msra.mxu0 0.0
    %1297 = vmatprep.subr.mxu0 0.0
    %1298 = vmatpush1.msra.mxu0 %v1269
    %1299 = vmatprep.subr.mxu0 0.0
    %1300 = vmatpush1.msra.mxu0 %v1268
    %1301 = vmatprep.subr.mxu0 0.0
    %1302 = vmatpush1.msra.mxu0 %v1267
    %1303 = vmatprep.subr.mxu0 0.0
    %1304 = vmatpush1.msra.mxu0 %v1266
    %1305 = vmatprep.subr.mxu0 0.0
    %1306 = vmatpush1.msra.mxu0 %v1265
    %1307 = vmatprep.subr.mxu0 0.0
    %1308 = vmatpush1.msra.mxu0 %v1264
    %1309 = vmatprep.subr.mxu0 0.0
    %1310 = vmatpush1.msra.mxu0 %v1263
    %1311 = vmatprep.subr.mxu0 0.0
    %1312 = vmatpush1.msra.mxu0 %v1262
    %1313 = vmatprep.subr.mxu0 0.0
    %1314 = vmatpush2.msra.mxu0 0.0
    %1315 = vmatprep.subr.mxu0 0.0
    %1316 = vmatpush2.msra.mxu0 0.0
    %1317 = vmatprep.subr.mxu0 0.0
    %1318 = vmatpush2.msra.mxu0 0.0
    %1319 = vmatprep.subr.mxu0 0.0
    %1320 = vmatpush2.msra.mxu0 0.0
    %1321 = vmatprep.subr.mxu0 0.0
    %1322 = vmatpush2.msra.mxu0 0.0
    %1323 = vmatprep.subr.mxu0 0.0
    %1324 = vmatpush2.msra.mxu0 0.0
    %1325 = vmatprep.subr.mxu0 0.0
    %1326 = vmatpush2.msra.mxu0 0.0
    %1327 = vmatprep.subr.mxu0 0.0
    %1328 = vmatpush2.msra.mxu0 0.0
    %1329 = vmatprep.subr.mxu0 0.0
    %1330 = vmatpush2.msra.mxu0 0.0
    %1331 = vmatprep.subr.mxu0 0.0
    %1332 = vmatpush2.msra.mxu0 0.0
    %1333 = vmatprep.subr.mxu0 0.0
    %1334 = vmatpush2.msra.mxu0 0.0
    %1335 = vmatprep.subr.mxu0 0.0
    %1336 = vmatpush2.msra.mxu0 0.0
    %1337 = vmatprep.subr.mxu0 0.0
    %1338 = vmatpush2.msra.mxu0 0.0
    %1339 = vmatprep.subr.mxu0 0.0
    %1340 = vmatpush2.msra.mxu0 0.0
    %1341 = vmatprep.subr.mxu0 0.0
    %1342 = vmatpush2.msra.mxu0 0.0
    %1343 = vmatprep.subr.mxu0 0.0
    %1344 = vmatpush2.msra.mxu0 0.0
    %1345 = vmatprep.mubr.f32.mxu0 0.0
    %1346 = vmatmul.mubr.f32.gmra.mxu0 %v1279
    %v1347 = vpop.f32.mrf.mxu0
    %v1348 = vadd.f32 %v1275, %v1347
    %v1349 = vpop.f32.mrf.mxu0
    %1350 = vdwg.mxu0
    %v1351 = vmax.f32 %v1348, 0.0
    %v1352 = vld [vmem:[#allocation10] sm:$0xff]
    %v1353 = vld [vmem:[#allocation10 + $0x8] sm:$0xff]
    %v1354 = vld [vmem:[#allocation10 + $0x10] sm:$0xff]
    %v1355 = vld [vmem:[#allocation10 + $0x18] sm:$0xff]
    %v1356 = vld [vmem:[#allocation10 + $0x20] sm:$0xff]
    %v1357 = vld [vmem:[#allocation10 + $0x28] sm:$0xff]
    %v1358 = vld [vmem:[#allocation10 + $0x30] sm:$0xff]
    %v1359 = vld [vmem:[#allocation10 + $0x38] sm:$0xff]
    %v1360 = vld [vmem:[#allocation10 + $0x40] sm:$0xff]
    %v1361 = vld [vmem:[#allocation10 + $0x48] sm:$0xff]
    %v1362 = vld [vmem:[#allocation10 + $0x50] sm:$0xff]
    %v1363 = vld [vmem:[#allocation10 + $0x58] sm:$0xff]
    %v1364 = vld [vmem:[#allocation10 + $0x60] sm:$0xff]
    %v1365 = vld [vmem:[#allocation10 + $0x68] sm:$0xff]
    %v1366 = vld [vmem:[#allocation10 + $0x70] sm:$0xff]
    %v1367 = vld [vmem:[#allocation10 + $0x78] sm:$0xff]
    %v1368 = vld [vmem:[#allocation10 + $0x80] sm:$0xff]
    %v1369 = vld [vmem:[#allocation10 + $0x88] sm:$0xff]
    %v1370 = vld [vmem:[#allocation10 + $0x90] sm:$0xff]
    %v1371 = vld [vmem:[#allocation10 + $0x98] sm:$0xff]
    %v1372 = vld [vmem:[#allocation10 + $0xa0] sm:$0xff]
    %v1373 = vld [vmem:[#allocation10 + $0xa8] sm:$0xff]
    %v1374 = vld [vmem:[#allocation10 + $0xb0] sm:$0xff]
    %v1375 = vld [vmem:[#allocation10 + $0xb8] sm:$0xff]
    %v1376 = vld [vmem:[#allocation10 + $0xc0] sm:$0xff]
    %v1377 = vld [vmem:[#allocation10 + $0xc8] sm:$0xff]
    %v1378 = vld [vmem:[#allocation10 + $0xd0] sm:$0xff]
    %v1379 = vld [vmem:[#allocation10 + $0xd8] sm:$0xff]
    %v1380 = vld [vmem:[#allocation10 + $0xe0] sm:$0xff]
    %v1381 = vld [vmem:[#allocation10 + $0xe8] sm:$0xff]
    %v1382 = vld [vmem:[#allocation10 + $0xf0] sm:$0xff]
    %v1383 = vld [vmem:[#allocation10 + $0xf8] sm:$0xff]
    %v1384 = vld [vmem:[#allocation10 + $0x100] sm:$0xff]
    %v1385 = vld [vmem:[#allocation10 + $0x108] sm:$0xff]
    %v1386 = vld [vmem:[#allocation10 + $0x110] sm:$0xff]
    %v1387 = vld [vmem:[#allocation10 + $0x118] sm:$0xff]
    %v1388 = vld [vmem:[#allocation10 + $0x120] sm:$0xff]
    %v1389 = vld [vmem:[#allocation10 + $0x128] sm:$0xff]
    %v1390 = vld [vmem:[#allocation10 + $0x130] sm:$0xff]
    %v1391 = vld [vmem:[#allocation10 + $0x138] sm:$0xff]
    %v1392 = vld [vmem:[#allocation10 + $0x140] sm:$0xff]
    %v1393 = vld [vmem:[#allocation10 + $0x148] sm:$0xff]
    %v1394 = vld [vmem:[#allocation10 + $0x150] sm:$0xff]
    %v1395 = vld [vmem:[#allocation10 + $0x158] sm:$0xff]
    %v1396 = vld [vmem:[#allocation10 + $0x160] sm:$0xff]
    %v1397 = vld [vmem:[#allocation10 + $0x168] sm:$0xff]
    %v1398 = vld [vmem:[#allocation10 + $0x170] sm:$0xff]
    %v1399 = vld [vmem:[#allocation10 + $0x178] sm:$0xff]
    %v1400 = vld [vmem:[#allocation10 + $0x180] sm:$0xff]
    %v1401 = vld [vmem:[#allocation10 + $0x188] sm:$0xff]
    %v1402 = vld [vmem:[#allocation10 + $0x190] sm:$0xff]
    %v1403 = vld [vmem:[#allocation10 + $0x198] sm:$0xff]
    %v1404 = vld [vmem:[#allocation10 + $0x1a0] sm:$0xff]
    %v1405 = vld [vmem:[#allocation10 + $0x1a8] sm:$0xff]
    %v1406 = vld [vmem:[#allocation10 + $0x1b0] sm:$0xff]
    %v1407 = vld [vmem:[#allocation10 + $0x1b8] sm:$0xff]
    %v1408 = vld [vmem:[#allocation10 + $0x1c0] sm:$0xff]
    %v1409 = vld [vmem:[#allocation10 + $0x1c8] sm:$0xff]
    %v1410 = vld [vmem:[#allocation10 + $0x1d0] sm:$0xff]
    %v1411 = vld [vmem:[#allocation10 + $0x1d8] sm:$0xff]
    %v1412 = vld [vmem:[#allocation10 + $0x1e0] sm:$0xff]
    %v1413 = vld [vmem:[#allocation10 + $0x1e8] sm:$0xff]
    %v1414 = vld [vmem:[#allocation10 + $0x1f0] sm:$0xff]
    %v1415 = vld [vmem:[#allocation10 + $0x1f8] sm:$0xff]
    %v1416 = vld [vmem:[%s11] sm:$0xf]
    %v1418 = vlaneseq
    %v1419 = vshrl.u32 %v1418, 7
    %v1420 = vsub.s32 0, %v1419
    %v1421 = vrot.slane %v1416, %v1420
    %v1422 = vlaneseq
    %v1423 = vshrl.u32 %v1422, 7
    %v1424 = vsub.s32 2, %v1423
    %v1425 = vrot.slane %v1416, %v1424
    %v1426 = vlaneseq
    %v1427 = vshrl.u32 %v1426, 7
    %v1428 = vsub.s32 3, %v1427
    %v1429 = vrot.slane %v1416, %v1428
    %1433 = vmatprep.subr.mxu0 %v1413
    %1434 = vmatpush1.msra.mxu0 %v1412
    %1435 = vmatprep.subr.mxu0 %v1409
    %1436 = vmatpush1.msra.mxu0 %v1408
    %1437 = vmatprep.subr.mxu0 %v1405
    %1438 = vmatpush1.msra.mxu0 %v1404
    %1439 = vmatprep.subr.mxu0 %v1401
    %1440 = vmatpush1.msra.mxu0 %v1400
    %1441 = vmatprep.subr.mxu0 %v1397
    %1442 = vmatpush1.msra.mxu0 %v1396
    %1443 = vmatprep.subr.mxu0 %v1393
    %1444 = vmatpush1.msra.mxu0 %v1392
    %1445 = vmatprep.subr.mxu0 %v1389
    %1446 = vmatpush1.msra.mxu0 %v1388
    %1447 = vmatprep.subr.mxu0 %v1385
    %1448 = vmatpush1.msra.mxu0 %v1384
    %1449 = vmatprep.subr.mxu0 %v1381
    %1450 = vmatpush1.msra.mxu0 %v1380
    %1451 = vmatprep.subr.mxu0 %v1377
    %1452 = vmatpush1.msra.mxu0 %v1376
    %1453 = vmatprep.subr.mxu0 %v1373
    %1454 = vmatpush1.msra.mxu0 %v1372
    %1455 = vmatprep.subr.mxu0 %v1369
    %1456 = vmatpush1.msra.mxu0 %v1368
    %1457 = vmatprep.subr.mxu0 %v1365
    %1458 = vmatpush1.msra.mxu0 %v1364
    %1459 = vmatprep.subr.mxu0 %v1361
    %1460 = vmatpush1.msra.mxu0 %v1360
    %1461 = vmatprep.subr.mxu0 %v1357
    %1462 = vmatpush1.msra.mxu0 %v1356
    %1463 = vmatprep.subr.mxu0 %v1353
    %1464 = vmatpush1.msra.mxu0 %v1352
    %1465 = vmatprep.subr.mxu0 0.0
    %1466 = vmatpush2.msra.mxu0 0.0
    %1467 = vmatprep.subr.mxu0 0.0
    %1468 = vmatpush2.msra.mxu0 0.0
    %1469 = vmatprep.subr.mxu0 0.0
    %1470 = vmatpush2.msra.mxu0 0.0
    %1471 = vmatprep.subr.mxu0 0.0
    %1472 = vmatpush2.msra.mxu0 0.0
    %1473 = vmatprep.subr.mxu0 0.0
    %1474 = vmatpush2.msra.mxu0 0.0
    %1475 = vmatprep.subr.mxu0 0.0
    %1476 = vmatpush2.msra.mxu0 0.0
    %1477 = vmatprep.subr.mxu0 0.0
    %1478 = vmatpush2.msra.mxu0 0.0
    %1479 = vmatprep.subr.mxu0 0.0
    %1480 = vmatpush2.msra.mxu0 0.0
    %1481 = vmatprep.subr.mxu0 0.0
    %1482 = vmatpush2.msra.mxu0 0.0
    %1483 = vmatprep.subr.mxu0 0.0
    %1484 = vmatpush2.msra.mxu0 0.0
    %1485 = vmatprep.subr.mxu0 0.0
    %1486 = vmatpush2.msra.mxu0 0.0
    %1487 = vmatprep.subr.mxu0 0.0
    %1488 = vmatpush2.msra.mxu0 0.0
    %1489 = vmatprep.subr.mxu0 0.0
    %1490 = vmatpush2.msra.mxu0 0.0
    %1491 = vmatprep.subr.mxu0 0.0
    %1492 = vmatpush2.msra.mxu0 0.0
    %1493 = vmatprep.subr.mxu0 0.0
    %1494 = vmatpush2.msra.mxu0 0.0
    %1495 = vmatprep.subr.mxu0 0.0
    %1496 = vmatpush2.msra.mxu0 0.0
    %1497 = vmatprep.mubr.f32.mxu0 0.0
    %1498 = vmatmul.mubr.f32.gmra.mxu0 %v1351
    %v1499 = vpop.f32.mrf.mxu0
    %v1500 = vadd.f32 %v1421, %v1499
    %v1501 = vpop.f32.mrf.mxu0
    %1502 = vdwg.mxu0
    %1503 = vmatprep.subr.mxu0 %v1415
    %1504 = vmatpush1.msra.mxu0 %v1414
    %1505 = vmatprep.subr.mxu0 %v1411
    %1506 = vmatpush1.msra.mxu0 %v1410
    %1507 = vmatprep.subr.mxu0 %v1407
    %1508 = vmatpush1.msra.mxu0 %v1406
    %1509 = vmatprep.subr.mxu0 %v1403
    %1510 = vmatpush1.msra.mxu0 %v1402
    %1511 = vmatprep.subr.mxu0 %v1399
    %1512 = vmatpush1.msra.mxu0 %v1398
    %1513 = vmatprep.subr.mxu0 %v1395
    %1514 = vmatpush1.msra.mxu0 %v1394
    %1515 = vmatprep.subr.mxu0 %v1391
    %1516 = vmatpush1.msra.mxu0 %v1390
    %1517 = vmatprep.subr.mxu0 %v1387
    %1518 = vmatpush1.msra.mxu0 %v1386
    %1519 = vmatprep.subr.mxu0 %v1383
    %1520 = vmatpush1.msra.mxu0 %v1382
    %1521 = vmatprep.subr.mxu0 %v1379
    %1522 = vmatpush1.msra.mxu0 %v1378
    %1523 = vmatprep.subr.mxu0 %v1375
    %1524 = vmatpush1.msra.mxu0 %v1374
    %1525 = vmatprep.subr.mxu0 %v1371
    %1526 = vmatpush1.msra.mxu0 %v1370
    %1527 = vmatprep.subr.mxu0 %v1367
    %1528 = vmatpush1.msra.mxu0 %v1366
    %1529 = vmatprep.subr.mxu0 %v1363
    %1530 = vmatpush1.msra.mxu0 %v1362
    %1531 = vmatprep.subr.mxu0 %v1359
    %1532 = vmatpush1.msra.mxu0 %v1358
    %1533 = vmatprep.subr.mxu0 %v1355
    %1534 = vmatpush1.msra.mxu0 %v1354
    %1535 = vmatprep.subr.mxu0 0.0
    %1536 = vmatpush2.msra.mxu0 0.0
    %1537 = vmatprep.subr.mxu0 0.0
    %1538 = vmatpush2.msra.mxu0 0.0
    %1539 = vmatprep.subr.mxu0 0.0
    %1540 = vmatpush2.msra.mxu0 0.0
    %1541 = vmatprep.subr.mxu0 0.0
    %1542 = vmatpush2.msra.mxu0 0.0
    %1543 = vmatprep.subr.mxu0 0.0
    %1544 = vmatpush2.msra.mxu0 0.0
    %1545 = vmatprep.subr.mxu0 0.0
    %1546 = vmatpush2.msra.mxu0 0.0
    %1547 = vmatprep.subr.mxu0 0.0
    %1548 = vmatpush2.msra.mxu0 0.0
    %1549 = vmatprep.subr.mxu0 0.0
    %1550 = vmatpush2.msra.mxu0 0.0
    %1551 = vmatprep.subr.mxu0 0.0
    %1552 = vmatpush2.msra.mxu0 0.0
    %1553 = vmatprep.subr.mxu0 0.0
    %1554 = vmatpush2.msra.mxu0 0.0
    %1555 = vmatprep.subr.mxu0 0.0
    %1556 = vmatpush2.msra.mxu0 0.0
    %1557 = vmatprep.subr.mxu0 0.0
    %1558 = vmatpush2.msra.mxu0 0.0
    %1559 = vmatprep.subr.mxu0 0.0
    %1560 = vmatpush2.msra.mxu0 0.0
    %1561 = vmatprep.subr.mxu0 0.0
    %1562 = vmatpush2.msra.mxu0 0.0
    %1563 = vmatprep.subr.mxu0 0.0
    %1564 = vmatpush2.msra.mxu0 0.0
    %1565 = vmatprep.subr.mxu0 0.0
    %1566 = vmatpush2.msra.mxu0 0.0
    %1567 = vmatprep.mubr.f32.mxu0 0.0
    %1568 = vmatmul.mubr.f32.gmra.mxu0 %v1351
    %v1569 = vpop.f32.mrf.mxu0
    %v1570 = vadd.f32 %v1425, %v1569
    %v1571 = vpop.f32.mrf.mxu0
    %v1572 = vadd.f32 %v1429, %v1571
    %1573 = vdwg.mxu0
    %v1574 = vmul.f32 %v1500, 0.5
    %v1575 = vtanh.pop %v1574
    %v1576 = vadd.f32 %v1575, 1.0
    %v1577 = vmul.f32 %v1576, 0.5
    %v1578 = vtanh.pop %v1570
    %v1579 = vmul.f32 %v1572, 0.5
    %v1580 = vtanh.pop %v1579
    %v1581 = vadd.f32 %v1580, 1.0
    %v1582 = vmul.f32 %v1581, 0.5
    %v1583 = vmul.f32 %v1577, %v1578
    %v1584 = vtanh.pop %v1583
    %v1585 = vmul.f32 %v1582, %v1584
    %1586 = vst [vmem:[#allocation12] sm:$0xff] %v1585
    %1587 = vst [vmem:[#allocation12 + $0x8] sm:$0xff] %v1583
    %v1588 = vmax.f32 %v1585, 0.0
    %v1589 = vld [vmem:[%s12] sm:$0xff]
    %v1590 = vld [vmem:[%s12 + $0x8] sm:$0xff]
    %v1591 = vld [vmem:[%s12 + $0x10] sm:$0xff]
    %v1592 = vld [vmem:[%s12 + $0x18] sm:$0xff]
    %v1593 = vld [vmem:[%s12 + $0x20] sm:$0xff]
    %v1594 = vld [vmem:[%s12 + $0x28] sm:$0xff]
    %v1595 = vld [vmem:[%s12 + $0x30] sm:$0xff]
    %v1596 = vld [vmem:[%s12 + $0x38] sm:$0xff]
    %v1597 = vld [vmem:[%s12 + $0x40] sm:$0xff]
    %v1598 = vld [vmem:[%s12 + $0x48] sm:$0xff]
    %v1599 = vld [vmem:[%s12 + $0x50] sm:$0xff]
    %v1600 = vld [vmem:[%s12 + $0x58] sm:$0xff]
    %v1601 = vld [vmem:[%s12 + $0x60] sm:$0xff]
    %v1602 = vld [vmem:[%s12 + $0x68] sm:$0xff]
    %v1603 = vld [vmem:[%s12 + $0x70] sm:$0xff]
    %v1604 = vld [vmem:[%s12 + $0x78] sm:$0xff]
    %v1605 = vld [vmem:[%s13] sm:$0x1]
    %v1607 = vlaneseq
    %v1608 = vshrl.u32 %v1607, 7
    %v1609 = vsub.s32 0, %v1608
    %v1610 = vrot.slane %v1605, %v1609
    %1612 = vmatprep.subr.mxu0 0.0
    %1613 = vmatpush1.msra.mxu0 %v1604
    %1614 = vmatprep.subr.mxu0 0.0
    %1615 = vmatpush1.msra.mxu0 %v1603
    %1616 = vmatprep.subr.mxu0 0.0
    %1617 = vmatpush1.msra.mxu0 %v1602
    %1618 = vmatprep.subr.mxu0 0.0
    %1619 = vmatpush1.msra.mxu0 %v1601
    %1620 = vmatprep.subr.mxu0 0.0
    %1621 = vmatpush1.msra.mxu0 %v1600
    %1622 = vmatprep.subr.mxu0 0.0
    %1623 = vmatpush1.msra.mxu0 %v1599
    %1624 = vmatprep.subr.mxu0 0.0
    %1625 = vmatpush1.msra.mxu0 %v1598
    %1626 = vmatprep.subr.mxu0 0.0
    %1627 = vmatpush1.msra.mxu0 %v1597
    %1628 = vmatprep.subr.mxu0 0.0
    %1629 = vmatpush1.msra.mxu0 %v1596
    %1630 = vmatprep.subr.mxu0 0.0
    %1631 = vmatpush1.msra.mxu0 %v1595
    %1632 = vmatprep.subr.mxu0 0.0
    %1633 = vmatpush1.msra.mxu0 %v1594
    %1634 = vmatprep.subr.mxu0 0.0
    %1635 = vmatpush1.msra.mxu0 %v1593
    %1636 = vmatprep.subr.mxu0 0.0
    %1637 = vmatpush1.msra.mxu0 %v1592
    %1638 = vmatprep.subr.mxu0 0.0
    %1639 = vmatpush1.msra.mxu0 %v1591
    %1640 = vmatprep.subr.mxu0 0.0
    %1641 = vmatpush1.msra.mxu0 %v1590
    %1642 = vmatprep.subr.mxu0 0.0
    %1643 = vmatpush1.msra.mxu0 %v1589
    %1644 = vmatprep.subr.mxu0 0.0
    %1645 = vmatpush2.msra.mxu0 0.0
    %1646 = vmatprep.subr.mxu0 0.0
    %1647 = vmatpush2.msra.mxu0 0.0
    %1648 = vmatprep.subr.mxu0 0.0
    %1649 = vmatpush2.msra.mxu0 0.0
    %1650 = vmatprep.subr.mxu0 0.0
    %1651 = vmatpush2.msra.mxu0 0.0
    %1652 = vmatprep.subr.mxu0 0.0
    %1653 = vmatpush2.msra.mxu0 0.0
    %1654 = vmatprep.subr.mxu0 0.0
    %1655 = vmatpush2.msra.mxu0 0.0
    %1656 = vmatprep.subr.mxu0 0.0
    %1657 = vmatpush2.msra.mxu0 0.0
    %1658 = vmatprep.subr.mxu0 0.0
    %1659 = vmatpush2.msra.mxu0 0.0
    %1660 = vmatprep.subr.mxu0 0.0
    %1661 = vmatpush2.msra.mxu0 0.0
    %1662 = vmatprep.subr.mxu0 0.0
    %1663 = vmatpush2.msra.mxu0 0.0
    %1664 = vmatprep.subr.mxu0 0.0
    %1665 = vmatpush2.msra.mxu0 0.0
    %1666 = vmatprep.subr.mxu0 0.0
    %1667 = vmatpush2.msra.mxu0 0.0
    %1668 = vmatprep.subr.mxu0 0.0
    %1669 = vmatpush2.msra.mxu0 0.0
    %1670 = vmatprep.subr.mxu0 0.0
    %1671 = vmatpush2.msra.mxu0 0.0
    %1672 = vmatprep.subr.mxu0 0.0
    %1673 = vmatpush2.msra.mxu0 0.0
    %1674 = vmatprep.subr.mxu0 0.0
    %1675 = vmatpush2.msra.mxu0 0.0
    %1676 = vmatprep.mubr.f32.mxu0 0.0
    %1677 = vmatmul.mubr.f32.gmra.mxu0 %v1588
    %v1678 = vpop.f32.mrf.mxu0
    %v1679 = vadd.f32 %v1610, %v1678
    %v1680 = vpop.f32.mrf.mxu0
    %1681 = vdwg.mxu0
    %v1682 = vmul.f32 %v1679, 0.5
    %v1683 = vtanh.pop %v1682
    %v1684 = vadd.f32 %v1683, 1.0
    %v1685 = vmul.f32 %v1684, 0.5
    %1686 = vst [vmem:[#allocation11] sm:$0xff] %v1685
    // Predicated region
    $region78: #{tpu_custom_call.1} parent=1 // pred_check
      _
    $region79: #{tpu_custom_call.1} parent=1 // pred_check_branch
      %1688 = sbr.rel (0) target = $region81
    $region80: #{tpu_custom_call.1} parent=1 // pred_region
      %s1690 = ssub.s32 128, 128
      %1691 = vsyncadd [#allocation4], %s1690
      %s1693 = sshll.u32 [#allocation11], 4
      %s1694 = int_to_ptr.vmem [resolvable:$true] %s1693
      %1696 = dma.vmem_to_hbm [thread:$0]  %s1694, 128, %s14, [#allocation4]
    $region81: #{tpu_custom_call.1} parent=1 // pred_fallthru
      _
    // Predicated region
    $region82: #{tpu_custom_call.1} parent=1 // pred_check
      _
    $region83: #{tpu_custom_call.1} parent=1 // pred_check_branch
      %1698 = sbr.rel (0) target = $region85
    $region84: #{tpu_custom_call.1} parent=1 // pred_region
      %s1700 = ssub.s32 256, 256
      %1701 = vsyncadd [#allocation13], %s1700
      %s1703 = sshll.u32 [#allocation12], 4
      %s1704 = int_to_ptr.vmem [resolvable:$true] %s1703
      %1706 = dma.vmem_to_hbm [thread:$0]  %s1704, 256, %s15, [#allocation13]
    $region85: #{tpu_custom_call.1} parent=1 // pred_fallthru
      _
    // Predicated region
    $region86: #{tpu_custom_call.1} parent=1 // pred_check
      _
    $region87: #{tpu_custom_call.1} parent=1 // pred_check_branch
      %1708 = sbr.rel (0) target = $region89
    $region88: #{tpu_custom_call.1} parent=1 // pred_region
      %1709 = dma.done [#allocation4], 128
    $region89: #{tpu_custom_call.1} parent=1 // pred_fallthru
      _
    // Predicated region
    $region90: #{tpu_custom_call.1} parent=1 // pred_check
      _
    $region91: #{tpu_custom_call.1} parent=1 // pred_check_branch
      %1711 = sbr.rel (0) target = $region93
    $region92: #{tpu_custom_call.1} parent=1 // pred_region
      %1712 = dma.done [#allocation13], 256
    $region93: #{tpu_custom_call.1} parent=1 // pred_fallthru
      _
    %1713 = vsyncpa [#allocation3], 1
    %1714 = vsyncpa [#allocation6], 1
    %1715 = vsyncpa [#allocation9], 1
    %1716 = vsyncpa [#allocation4], 1
    %1717 = vsyncpa [#allocation13], 1

</llo_original>
